<compile_context>
chip_gen: v7x
topology: tpu7x:2x2x1
jax: 0.10.0
libtpu: 0.0.40
codegen_flags: <defaults>
</compile_context>

<pallas_src>
import functools

import numpy as np
import jax
import jax.numpy as jnp
from jax import lax
from jax.experimental import pallas as pl
from jax.experimental.pallas import tpu as pltpu


# --------------------------------------------------------------------------- #
# Static (data independent) index maps for the expanded conv weights.
#
# Spatial encoding: the padded 32x32 input is split mod-4 into a coarse 8x8
# grid: xqf[P*4+Q, n*64 + i*8 + j] = xpad[n, 4i+P, 4j+Q].
# Layer-1 conv output pixel (Y,X) is written Y = 4a + Ty, X = 4b + Tx with
# Ty = 2p + dy (p = pool-cell parity, dy = pool position), so every tap of the
# 5x5 kernel reads the coarse grid shifted by (cr, cs) in {0,1}^2 -- i.e. a
# lane roll of xqf by cr*8 + cs.  Grouping output rows as (dy,dx | p,q | c)
# makes 2x2 max-pooling a max over 4 aligned 64-row blocks, and the pooled
# result is already in the parity-plane layout that layer 2 needs, where every
# 5x5 tap is a lane roll by dy'*8 + dx' with dy',dx' in {-1,0,1} (the masked
# i==7 / j==7 lanes double as the zero padding).
# --------------------------------------------------------------------------- #
def _layer1_scatter_indices():
    rows, cols, src = [], [], []
    for dy in range(2):
        for dx in range(2):
            for p in range(2):
                for q in range(2):
                    g = (dy * 2 + dx) * 4 + (p * 2 + q)
                    ty, tx = 2 * p + dy, 2 * q + dx
                    for co in range(16):
                        for r in range(5):
                            for s in range(5):
                                u, v = ty + r, tx + s
                                cr, pp = u // 4, u % 4
                                cs, qq = v // 4, v % 4
                                rows.append(g * 16 + co)
                                cols.append((cr * 2 + cs) * 16 + pp * 4 + qq)
                                src.append(co * 25 + r * 5 + s)
    return np.asarray(rows), np.asarray(cols), np.asarray(src)


def _layer2_scatter_indices():
    rows, cols, src = [], [], []
    for dy in range(2):
        for dx in range(2):
            chunk = dy * 2 + dx
            for c2 in range(32):
                for c1 in range(16):
                    for r in range(5):
                        for s in range(5):
                            e = dy + r - 2           # -2 .. 3
                            f = dx + s - 2
                            dyp, pp = e // 2, e % 2  # roll / parity split
                            dxp, qp = f // 2, f % 2
                            rows.append(chunk * 32 + c2)
                            cols.append(((dyp + 1) * 3 + (dxp + 1)) * 64
                                        + (pp * 2 + qp) * 16 + c1)
                            src.append((c2 * 16 + c1) * 25 + r * 5 + s)
    return np.asarray(rows), np.asarray(cols), np.asarray(src)


_L1_ROWS, _L1_COLS, _L1_SRC = _layer1_scatter_indices()
_L2_ROWS, _L2_COLS, _L2_SRC = _layer2_scatter_indices()


# ------------------------------ Pallas kernel ------------------------------- #
def _lane_roll(x, k):
    """result[:, l] = x[:, (l + k) % L]  (static slices + concat only)."""
    lanes = x.shape[1]
    k = k % lanes
    if k == 0:
        return x
    return jnp.concatenate([x[:, k:], x[:, :k]], axis=1)


def _fused_forward_kernel(xqf_ref, w1_ref, b1_ref, mask_ref, w2_ref, b2_ref,
                          wl_ref, bl_ref, logits_ref, feat_ref, *, batch):
    f32 = jnp.float32
    xqf = xqf_ref[...]                                       # (16, B*64) bf16

    # ---- layer 1: conv(1->16, 5x5, pad 2) + bias + ReLU + maxpool(2) -------
    rall1 = jnp.concatenate(
        [xqf, _lane_roll(xqf, 1), _lane_roll(xqf, 8), _lane_roll(xqf, 9)],
        axis=0)                                              # (64, B*64)
    conv1 = jnp.dot(w1_ref[...], rall1,
                    preferred_element_type=f32)              # (256, B*64)
    pool1 = jnp.maximum(jnp.maximum(conv1[0:64], conv1[64:128]),
                        jnp.maximum(conv1[128:192], conv1[192:256]))
    # max commutes with (+bias) and ReLU; mask zeroes the unused i==7/j==7
    # lanes so they act as the zero padding for layer 2's rolls.
    act1 = jnp.maximum(pool1 + b1_ref[...], 0.0) * mask_ref[...]   # (64, B*64)

    # ---- layer 2: conv(16->32, 5x5, pad 2) + bias + ReLU + maxpool(2) ------
    a1 = act1.astype(jnp.bfloat16)
    copies = [_lane_roll(a1, dy * 8 + dx)
              for dy in (-1, 0, 1) for dx in (-1, 0, 1)]
    rall2 = jnp.concatenate(copies, axis=0)                  # (576, B*64)
    conv2 = jnp.dot(w2_ref[...], rall2,
                    preferred_element_type=f32)              # (128, B*64)
    pool2 = jnp.maximum(jnp.maximum(conv2[0:32], conv2[32:64]),
                        jnp.maximum(conv2[64:96], conv2[96:128]))
    act2 = jnp.maximum(pool2 + b2_ref[...], 0.0)             # (32, B*64)

    # ---- flatten in torch NCHW order + Linear(1568, 10) --------------------
    feat_rows = []
    for n in range(batch):
        blk = act2[:, n * 64:(n + 1) * 64]                   # (32, 64)
        blk49 = jnp.concatenate(
            [blk[:, i * 8:i * 8 + 7] for i in range(7)], axis=1)   # (32, 49)
        feat_rows.append(
            jnp.concatenate([blk49[c:c + 1, :] for c in range(32)], axis=1))
    feat = jnp.concatenate(feat_rows, axis=0)                # (B, 1568), f32
    feat_ref[...] = feat
    logits_ref[...] = (jnp.dot(feat, wl_ref[...],
                               preferred_element_type=f32) + bl_ref[...])


# ------------------------------- JAX wrapper -------------------------------- #
def _deinterleave_input(x_nchw):
    """(N,1,28,28) -> (16, N*64): xqf[P*4+Q, n*64+i*8+j] = xpad[n,4i+P,4j+Q]."""
    n = x_nchw.shape[0]
    xp = jnp.pad(x_nchw[:, 0], ((0, 0), (2, 2), (2, 2)))     # (N, 32, 32)
    xq = xp.reshape(n, 8, 4, 8, 4).transpose(2, 4, 0, 1, 3)  # (4, 4, N, 8, 8)
    return xq.reshape(16, n * 64).astype(jnp.bfloat16)


def _expand_params(params):
    f32 = jnp.float32
    w1 = params["w1"].astype(f32).reshape(-1)                # (16*25,)
    w1all = jnp.zeros((256, 64), f32).at[_L1_ROWS, _L1_COLS].set(w1[_L1_SRC])
    w2 = params["w2"].astype(f32).reshape(-1)                # (32*16*25,)
    w2all = jnp.zeros((128, 576), f32).at[_L2_ROWS, _L2_COLS].set(w2[_L2_SRC])
    b1r = jnp.tile(params["b1"].astype(f32), 4).reshape(64, 1)
    b2r = params["b2"].astype(f32).reshape(32, 1)
    wlt = params["wl"].astype(f32).T                         # (1568, 10)
    blr = params["bl"].astype(f32).reshape(1, 10)
    return (w1all.astype(jnp.bfloat16), b1r,
            w2all.astype(jnp.bfloat16), b2r, wlt, blr)


@jax.jit
def model_forward(x_nchw, params):
    assert x_nchw.shape[1:] == (1, 28, 28), "expects (N, 1, 28, 28) input"
    n = x_nchw.shape[0]
    lanes = n * 64

    xqf = _deinterleave_input(x_nchw)
    w1all, b1r, w2all, b2r, wlt, blr = _expand_params(params)

    # Valid output cells are (i, j) <= 6 on the per-image 8x8 coarse grid.
    m = np.zeros((n, 8, 8), np.float32)
    m[:, :7, :7] = 1.0
    mask = jnp.asarray(m.reshape(1, lanes))

    def spec(shape):
        return pl.BlockSpec(shape, lambda i: (0,) * len(shape))

    kernel = functools.partial(_fused_forward_kernel, batch=n)
    logits, feat = pl.pallas_call(
        kernel,
        grid=(1,),
        in_specs=[spec((16, lanes)),   # xqf
                  spec((256, 64)),     # expanded w1
                  spec((64, 1)),       # bias 1 (tiled over parity groups)
                  spec((1, lanes)),    # valid-lane mask
                  spec((128, 576)),    # expanded w2
                  spec((32, 1)),       # bias 2
                  spec((1568, 10)),    # linear weight (K, 10)
                  spec((1, 10))],      # linear bias
        out_specs=(spec((n, 10)), spec((n, 1568))),
        out_shape=(jax.ShapeDtypeStruct((n, 10), jnp.float32),
                   jax.ShapeDtypeStruct((n, 1568), jnp.float32)),
        compiler_params=pltpu.CompilerParams(
            dimension_semantics=("arbitrary",)),
    )(xqf, w1all, b1r, mask, w2all, b2r, wlt, blr)
    return logits, feat


def init_params():
    key = jax.random.PRNGKey(42)
    k = jax.random.split(key, 6)
    return dict(
        w1=jax.random.normal(k[0], (16, 1, 5, 5), jnp.float32) * 0.2,
        b1=jax.random.normal(k[1], (16,), jnp.float32) * 0.1,
        w2=jax.random.normal(k[2], (32, 16, 5, 5), jnp.float32) * 0.05,
        b2=jax.random.normal(k[3], (32,), jnp.float32) * 0.1,
        wl=jax.random.normal(k[4], (10, 32 * 7 * 7), jnp.float32) * 0.02,
        bl=jax.random.normal(k[5], (10,), jnp.float32) * 0.1,
    )


# Pure-JAX reference (for correctness checking only).
def ref_forward(x_nchw, params):
    def block(x, w, b):
        y = lax.conv_general_dilated(
            x, w, window_strides=(1, 1), padding=((2, 2), (2, 2)),
            dimension_numbers=("NCHW", "OIHW", "NCHW"))
        y = jax.nn.relu(y + b[None, :, None, None])
        return lax.reduce_window(y, -jnp.inf, lax.max,
                                 (1, 1, 2, 2), (1, 1, 2, 2), "VALID")
    y = block(x_nchw, params["w1"], params["b1"])
    y = block(y, params["w2"], params["b2"])
    feat = y.reshape(y.shape[0], -1)
    logits = feat @ params["wl"].T + params["bl"]
    return logits, feat


if __name__ == "__main__":
    params = init_params()
    # MNIST-style input implied by Linear(32*7*7, 10): (N, 1, 28, 28).
    x = jax.random.normal(jax.random.PRNGKey(0), (2, 1, 28, 28), jnp.float32)

    logits, feat = model_forward(x, params)
    jax.block_until_ready((logits, feat))

    assert logits.shape == (2, 10) and logits.dtype == jnp.float32
    assert feat.shape == (2, 32 * 7 * 7) and feat.dtype == jnp.float32

    ref_logits, ref_feat = ref_forward(x, params)
    assert jnp.allclose(feat, ref_feat, rtol=2e-2, atol=2e-2), "feat mismatch"
    assert jnp.allclose(logits, ref_logits, rtol=2e-2, atol=2e-2), "logit mismatch"

    print("KERNEL_OK")
</pallas_src>

<mosaic_0001>
module attributes {stable_mosaic.version = 11 : i64} {
  func.func @_fused_forward_kernel(%arg0: i32, %arg1: memref<16x128xbf16, #tpu.memory_space<vmem>>, %arg2: memref<256x64xbf16, #tpu.memory_space<vmem>>, %arg3: memref<64x1xf32, #tpu.memory_space<vmem>>, %arg4: memref<1x128xf32, #tpu.memory_space<vmem>>, %arg5: memref<128x576xbf16, #tpu.memory_space<vmem>>, %arg6: memref<32x1xf32, #tpu.memory_space<vmem>>, %arg7: memref<1568x10xf32, #tpu.memory_space<vmem>>, %arg8: memref<1x10xf32, #tpu.memory_space<vmem>>, %arg9: memref<2x10xf32, #tpu.memory_space<vmem>>, %arg10: memref<2x1568xf32, #tpu.memory_space<vmem>>) attributes {dimension_semantics = [#tpu.dimension_semantics<arbitrary>], iteration_bounds = array<i64: 1>, scalar_prefetch = 0 : i64, scratch_operands = 0 : i64, tpu.core_type = #tpu.core_type<tc>, window_params = [{pipeline_mode = #tpu.pipeline_mode<synchronous>, transform_indices = @transform_0, window_bounds = array<i64: 16, 128>}, {pipeline_mode = #tpu.pipeline_mode<synchronous>, transform_indices = @transform_1, window_bounds = array<i64: 256, 64>}, {pipeline_mode = #tpu.pipeline_mode<synchronous>, transform_indices = @transform_2, window_bounds = array<i64: 64, 1>}, {pipeline_mode = #tpu.pipeline_mode<synchronous>, transform_indices = @transform_3, window_bounds = array<i64: 1, 128>}, {pipeline_mode = #tpu.pipeline_mode<synchronous>, transform_indices = @transform_4, window_bounds = array<i64: 128, 576>}, {pipeline_mode = #tpu.pipeline_mode<synchronous>, transform_indices = @transform_5, window_bounds = array<i64: 32, 1>}, {pipeline_mode = #tpu.pipeline_mode<synchronous>, transform_indices = @transform_6, window_bounds = array<i64: 1568, 10>}, {pipeline_mode = #tpu.pipeline_mode<synchronous>, transform_indices = @transform_7, window_bounds = array<i64: 1, 10>}, {pipeline_mode = #tpu.pipeline_mode<synchronous>, transform_indices = @transform_8, window_bounds = array<i64: 2, 10>}, {pipeline_mode = #tpu.pipeline_mode<synchronous>, transform_indices = @transform_9, window_bounds = array<i64: 2, 1568>}]} {
    %c0 = arith.constant 0 : index
    %c0_0 = arith.constant 0 : index
    %0 = vector.load %arg1[%c0, %c0_0] : memref<16x128xbf16, #tpu.memory_space<vmem>>, vector<16x128xbf16>
    %1 = vector.extract_strided_slice %0 {offsets = [0, 1], sizes = [16, 127], strides = [1, 1]} : vector<16x128xbf16> to vector<16x127xbf16>
    %2 = vector.extract_strided_slice %0 {offsets = [0, 0], sizes = [16, 1], strides = [1, 1]} : vector<16x128xbf16> to vector<16x1xbf16>
    %3 = tpu.concatenate %1, %2 in 1 : vector<16x127xbf16>, vector<16x1xbf16> -> vector<16x128xbf16>
    %4 = vector.extract_strided_slice %0 {offsets = [0, 8], sizes = [16, 120], strides = [1, 1]} : vector<16x128xbf16> to vector<16x120xbf16>
    %5 = vector.extract_strided_slice %0 {offsets = [0, 0], sizes = [16, 8], strides = [1, 1]} : vector<16x128xbf16> to vector<16x8xbf16>
    %6 = tpu.concatenate %4, %5 in 1 : vector<16x120xbf16>, vector<16x8xbf16> -> vector<16x128xbf16>
    %7 = vector.extract_strided_slice %0 {offsets = [0, 9], sizes = [16, 119], strides = [1, 1]} : vector<16x128xbf16> to vector<16x119xbf16>
    %8 = vector.extract_strided_slice %0 {offsets = [0, 0], sizes = [16, 9], strides = [1, 1]} : vector<16x128xbf16> to vector<16x9xbf16>
    %9 = tpu.concatenate %7, %8 in 1 : vector<16x119xbf16>, vector<16x9xbf16> -> vector<16x128xbf16>
    %10 = tpu.concatenate %0, %3, %6, %9 in 0 : vector<16x128xbf16>, vector<16x128xbf16>, vector<16x128xbf16>, vector<16x128xbf16> -> vector<64x128xbf16>
    %c0_1 = arith.constant 0 : index
    %c0_2 = arith.constant 0 : index
    %11 = vector.load %arg2[%c0_1, %c0_2] : memref<256x64xbf16, #tpu.memory_space<vmem>>, vector<256x64xbf16>
    %cst = arith.constant dense<0.000000e+00> : vector<256x128xf32>
    %12 = tpu.matmul %11, %10, %cst {dimension_numbers = #tpu.dot_dimension_numbers<[1], [0], [0], [1], [0, 0, 1, 1], [], []>} : vector<256x64xbf16>, vector<64x128xbf16>, vector<256x128xf32> -> vector<256x128xf32>
    %13 = vector.extract_strided_slice %12 {offsets = [0, 0], sizes = [64, 128], strides = [1, 1]} : vector<256x128xf32> to vector<64x128xf32>
    %14 = vector.extract_strided_slice %12 {offsets = [64, 0], sizes = [64, 128], strides = [1, 1]} : vector<256x128xf32> to vector<64x128xf32>
    %15 = arith.maximumf %13, %14 : vector<64x128xf32>
    %16 = vector.extract_strided_slice %12 {offsets = [128, 0], sizes = [64, 128], strides = [1, 1]} : vector<256x128xf32> to vector<64x128xf32>
    %17 = vector.extract_strided_slice %12 {offsets = [192, 0], sizes = [64, 128], strides = [1, 1]} : vector<256x128xf32> to vector<64x128xf32>
    %18 = arith.maximumf %16, %17 : vector<64x128xf32>
    %19 = arith.maximumf %15, %18 : vector<64x128xf32>
    %c0_3 = arith.constant 0 : index
    %c0_4 = arith.constant 0 : index
    %20 = vector.load %arg3[%c0_3, %c0_4] : memref<64x1xf32, #tpu.memory_space<vmem>>, vector<64x1xf32>
    %21 = vector.broadcast %20 : vector<64x1xf32> to vector<64x128xf32>
    %22 = arith.addf %19, %21 : vector<64x128xf32>
    %cst_5 = arith.constant 0.000000e+00 : f32
    %23 = vector.broadcast %cst_5 : f32 to vector<64x128xf32>
    %24 = arith.maximumf %22, %23 : vector<64x128xf32>
    %c0_6 = arith.constant 0 : index
    %c0_7 = arith.constant 0 : index
    %25 = vector.load %arg4[%c0_6, %c0_7] : memref<1x128xf32, #tpu.memory_space<vmem>>, vector<1x128xf32>
    %26 = vector.broadcast %25 : vector<1x128xf32> to vector<64x128xf32>
    %27 = arith.mulf %24, %26 : vector<64x128xf32>
    %28 = arith.truncf %27 : vector<64x128xf32> to vector<64x128xbf16>
    %29 = vector.extract_strided_slice %28 {offsets = [0, 119], sizes = [64, 9], strides = [1, 1]} : vector<64x128xbf16> to vector<64x9xbf16>
    %30 = vector.extract_strided_slice %28 {offsets = [0, 0], sizes = [64, 119], strides = [1, 1]} : vector<64x128xbf16> to vector<64x119xbf16>
    %31 = tpu.concatenate %29, %30 in 1 : vector<64x9xbf16>, vector<64x119xbf16> -> vector<64x128xbf16>
    %32 = vector.extract_strided_slice %28 {offsets = [0, 120], sizes = [64, 8], strides = [1, 1]} : vector<64x128xbf16> to vector<64x8xbf16>
    %33 = vector.extract_strided_slice %28 {offsets = [0, 0], sizes = [64, 120], strides = [1, 1]} : vector<64x128xbf16> to vector<64x120xbf16>
    %34 = tpu.concatenate %32, %33 in 1 : vector<64x8xbf16>, vector<64x120xbf16> -> vector<64x128xbf16>
    %35 = vector.extract_strided_slice %28 {offsets = [0, 121], sizes = [64, 7], strides = [1, 1]} : vector<64x128xbf16> to vector<64x7xbf16>
    %36 = vector.extract_strided_slice %28 {offsets = [0, 0], sizes = [64, 121], strides = [1, 1]} : vector<64x128xbf16> to vector<64x121xbf16>
    %37 = tpu.concatenate %35, %36 in 1 : vector<64x7xbf16>, vector<64x121xbf16> -> vector<64x128xbf16>
    %38 = vector.extract_strided_slice %28 {offsets = [0, 127], sizes = [64, 1], strides = [1, 1]} : vector<64x128xbf16> to vector<64x1xbf16>
    %39 = vector.extract_strided_slice %28 {offsets = [0, 0], sizes = [64, 127], strides = [1, 1]} : vector<64x128xbf16> to vector<64x127xbf16>
    %40 = tpu.concatenate %38, %39 in 1 : vector<64x1xbf16>, vector<64x127xbf16> -> vector<64x128xbf16>
    %41 = vector.extract_strided_slice %28 {offsets = [0, 1], sizes = [64, 127], strides = [1, 1]} : vector<64x128xbf16> to vector<64x127xbf16>
    %42 = vector.extract_strided_slice %28 {offsets = [0, 0], sizes = [64, 1], strides = [1, 1]} : vector<64x128xbf16> to vector<64x1xbf16>
    %43 = tpu.concatenate %41, %42 in 1 : vector<64x127xbf16>, vector<64x1xbf16> -> vector<64x128xbf16>
    %44 = vector.extract_strided_slice %28 {offsets = [0, 7], sizes = [64, 121], strides = [1, 1]} : vector<64x128xbf16> to vector<64x121xbf16>
    %45 = vector.extract_strided_slice %28 {offsets = [0, 0], sizes = [64, 7], strides = [1, 1]} : vector<64x128xbf16> to vector<64x7xbf16>
    %46 = tpu.concatenate %44, %45 in 1 : vector<64x121xbf16>, vector<64x7xbf16> -> vector<64x128xbf16>
    %47 = vector.extract_strided_slice %28 {offsets = [0, 8], sizes = [64, 120], strides = [1, 1]} : vector<64x128xbf16> to vector<64x120xbf16>
    %48 = vector.extract_strided_slice %28 {offsets = [0, 0], sizes = [64, 8], strides = [1, 1]} : vector<64x128xbf16> to vector<64x8xbf16>
    %49 = tpu.concatenate %47, %48 in 1 : vector<64x120xbf16>, vector<64x8xbf16> -> vector<64x128xbf16>
    %50 = vector.extract_strided_slice %28 {offsets = [0, 9], sizes = [64, 119], strides = [1, 1]} : vector<64x128xbf16> to vector<64x119xbf16>
    %51 = vector.extract_strided_slice %28 {offsets = [0, 0], sizes = [64, 9], strides = [1, 1]} : vector<64x128xbf16> to vector<64x9xbf16>
    %52 = tpu.concatenate %50, %51 in 1 : vector<64x119xbf16>, vector<64x9xbf16> -> vector<64x128xbf16>
    %53 = tpu.concatenate %31, %34, %37, %40, %28, %43, %46, %49, %52 in 0 : vector<64x128xbf16>, vector<64x128xbf16>, vector<64x128xbf16>, vector<64x128xbf16>, vector<64x128xbf16>, vector<64x128xbf16>, vector<64x128xbf16>, vector<64x128xbf16>, vector<64x128xbf16> -> vector<576x128xbf16>
    %c0_8 = arith.constant 0 : index
    %c0_9 = arith.constant 0 : index
    %54 = vector.load %arg5[%c0_8, %c0_9] : memref<128x576xbf16, #tpu.memory_space<vmem>>, vector<128x576xbf16>
    %cst_10 = arith.constant dense<0.000000e+00> : vector<128x128xf32>
    %55 = tpu.matmul %54, %53, %cst_10 {dimension_numbers = #tpu.dot_dimension_numbers<[1], [0], [0], [1], [0, 0, 1, 1], [], []>} : vector<128x576xbf16>, vector<576x128xbf16>, vector<128x128xf32> -> vector<128x128xf32>
    %56 = vector.extract_strided_slice %55 {offsets = [0, 0], sizes = [32, 128], strides = [1, 1]} : vector<128x128xf32> to vector<32x128xf32>
    %57 = vector.extract_strided_slice %55 {offsets = [32, 0], sizes = [32, 128], strides = [1, 1]} : vector<128x128xf32> to vector<32x128xf32>
    %58 = arith.maximumf %56, %57 : vector<32x128xf32>
    %59 = vector.extract_strided_slice %55 {offsets = [64, 0], sizes = [32, 128], strides = [1, 1]} : vector<128x128xf32> to vector<32x128xf32>
    %60 = vector.extract_strided_slice %55 {offsets = [96, 0], sizes = [32, 128], strides = [1, 1]} : vector<128x128xf32> to vector<32x128xf32>
    %61 = arith.maximumf %59, %60 : vector<32x128xf32>
    %62 = arith.maximumf %58, %61 : vector<32x128xf32>
    %c0_11 = arith.constant 0 : index
    %c0_12 = arith.constant 0 : index
    %63 = vector.load %arg6[%c0_11, %c0_12] : memref<32x1xf32, #tpu.memory_space<vmem>>, vector<32x1xf32>
    %64 = vector.broadcast %63 : vector<32x1xf32> to vector<32x128xf32>
    %65 = arith.addf %62, %64 : vector<32x128xf32>
    %cst_13 = arith.constant 0.000000e+00 : f32
    %66 = vector.broadcast %cst_13 : f32 to vector<32x128xf32>
    %67 = arith.maximumf %65, %66 : vector<32x128xf32>
    %68 = vector.extract_strided_slice %67 {offsets = [0, 0], sizes = [32, 64], strides = [1, 1]} : vector<32x128xf32> to vector<32x64xf32>
    %69 = vector.extract_strided_slice %68 {offsets = [0, 0], sizes = [32, 7], strides = [1, 1]} : vector<32x64xf32> to vector<32x7xf32>
    %70 = vector.extract_strided_slice %68 {offsets = [0, 8], sizes = [32, 7], strides = [1, 1]} : vector<32x64xf32> to vector<32x7xf32>
    %71 = vector.extract_strided_slice %68 {offsets = [0, 16], sizes = [32, 7], strides = [1, 1]} : vector<32x64xf32> to vector<32x7xf32>
    %72 = vector.extract_strided_slice %68 {offsets = [0, 24], sizes = [32, 7], strides = [1, 1]} : vector<32x64xf32> to vector<32x7xf32>
    %73 = vector.extract_strided_slice %68 {offsets = [0, 32], sizes = [32, 7], strides = [1, 1]} : vector<32x64xf32> to vector<32x7xf32>
    %74 = vector.extract_strided_slice %68 {offsets = [0, 40], sizes = [32, 7], strides = [1, 1]} : vector<32x64xf32> to vector<32x7xf32>
    %75 = vector.extract_strided_slice %68 {offsets = [0, 48], sizes = [32, 7], strides = [1, 1]} : vector<32x64xf32> to vector<32x7xf32>
    %76 = tpu.concatenate %69, %70, %71, %72, %73, %74, %75 in 1 : vector<32x7xf32>, vector<32x7xf32>, vector<32x7xf32>, vector<32x7xf32>, vector<32x7xf32>, vector<32x7xf32>, vector<32x7xf32> -> vector<32x49xf32>
    %77 = vector.extract_strided_slice %76 {offsets = [0, 0], sizes = [1, 49], strides = [1, 1]} : vector<32x49xf32> to vector<1x49xf32>
    %78 = vector.extract_strided_slice %76 {offsets = [1, 0], sizes = [1, 49], strides = [1, 1]} : vector<32x49xf32> to vector<1x49xf32>
    %79 = vector.extract_strided_slice %76 {offsets = [2, 0], sizes = [1, 49], strides = [1, 1]} : vector<32x49xf32> to vector<1x49xf32>
    %80 = vector.extract_strided_slice %76 {offsets = [3, 0], sizes = [1, 49], strides = [1, 1]} : vector<32x49xf32> to vector<1x49xf32>
    %81 = vector.extract_strided_slice %76 {offsets = [4, 0], sizes = [1, 49], strides = [1, 1]} : vector<32x49xf32> to vector<1x49xf32>
    %82 = vector.extract_strided_slice %76 {offsets = [5, 0], sizes = [1, 49], strides = [1, 1]} : vector<32x49xf32> to vector<1x49xf32>
    %83 = vector.extract_strided_slice %76 {offsets = [6, 0], sizes = [1, 49], strides = [1, 1]} : vector<32x49xf32> to vector<1x49xf32>
    %84 = vector.extract_strided_slice %76 {offsets = [7, 0], sizes = [1, 49], strides = [1, 1]} : vector<32x49xf32> to vector<1x49xf32>
    %85 = vector.extract_strided_slice %76 {offsets = [8, 0], sizes = [1, 49], strides = [1, 1]} : vector<32x49xf32> to vector<1x49xf32>
    %86 = vector.extract_strided_slice %76 {offsets = [9, 0], sizes = [1, 49], strides = [1, 1]} : vector<32x49xf32> to vector<1x49xf32>
    %87 = vector.extract_strided_slice %76 {offsets = [10, 0], sizes = [1, 49], strides = [1, 1]} : vector<32x49xf32> to vector<1x49xf32>
    %88 = vector.extract_strided_slice %76 {offsets = [11, 0], sizes = [1, 49], strides = [1, 1]} : vector<32x49xf32> to vector<1x49xf32>
    %89 = vector.extract_strided_slice %76 {offsets = [12, 0], sizes = [1, 49], strides = [1, 1]} : vector<32x49xf32> to vector<1x49xf32>
    %90 = vector.extract_strided_slice %76 {offsets = [13, 0], sizes = [1, 49], strides = [1, 1]} : vector<32x49xf32> to vector<1x49xf32>
    %91 = vector.extract_strided_slice %76 {offsets = [14, 0], sizes = [1, 49], strides = [1, 1]} : vector<32x49xf32> to vector<1x49xf32>
    %92 = vector.extract_strided_slice %76 {offsets = [15, 0], sizes = [1, 49], strides = [1, 1]} : vector<32x49xf32> to vector<1x49xf32>
    %93 = vector.extract_strided_slice %76 {offsets = [16, 0], sizes = [1, 49], strides = [1, 1]} : vector<32x49xf32> to vector<1x49xf32>
    %94 = vector.extract_strided_slice %76 {offsets = [17, 0], sizes = [1, 49], strides = [1, 1]} : vector<32x49xf32> to vector<1x49xf32>
    %95 = vector.extract_strided_slice %76 {offsets = [18, 0], sizes = [1, 49], strides = [1, 1]} : vector<32x49xf32> to vector<1x49xf32>
    %96 = vector.extract_strided_slice %76 {offsets = [19, 0], sizes = [1, 49], strides = [1, 1]} : vector<32x49xf32> to vector<1x49xf32>
    %97 = vector.extract_strided_slice %76 {offsets = [20, 0], sizes = [1, 49], strides = [1, 1]} : vector<32x49xf32> to vector<1x49xf32>
    %98 = vector.extract_strided_slice %76 {offsets = [21, 0], sizes = [1, 49], strides = [1, 1]} : vector<32x49xf32> to vector<1x49xf32>
    %99 = vector.extract_strided_slice %76 {offsets = [22, 0], sizes = [1, 49], strides = [1, 1]} : vector<32x49xf32> to vector<1x49xf32>
    %100 = vector.extract_strided_slice %76 {offsets = [23, 0], sizes = [1, 49], strides = [1, 1]} : vector<32x49xf32> to vector<1x49xf32>
    %101 = vector.extract_strided_slice %76 {offsets = [24, 0], sizes = [1, 49], strides = [1, 1]} : vector<32x49xf32> to vector<1x49xf32>
    %102 = vector.extract_strided_slice %76 {offsets = [25, 0], sizes = [1, 49], strides = [1, 1]} : vector<32x49xf32> to vector<1x49xf32>
    %103 = vector.extract_strided_slice %76 {offsets = [26, 0], sizes = [1, 49], strides = [1, 1]} : vector<32x49xf32> to vector<1x49xf32>
    %104 = vector.extract_strided_slice %76 {offsets = [27, 0], sizes = [1, 49], strides = [1, 1]} : vector<32x49xf32> to vector<1x49xf32>
    %105 = vector.extract_strided_slice %76 {offsets = [28, 0], sizes = [1, 49], strides = [1, 1]} : vector<32x49xf32> to vector<1x49xf32>
    %106 = vector.extract_strided_slice %76 {offsets = [29, 0], sizes = [1, 49], strides = [1, 1]} : vector<32x49xf32> to vector<1x49xf32>
    %107 = vector.extract_strided_slice %76 {offsets = [30, 0], sizes = [1, 49], strides = [1, 1]} : vector<32x49xf32> to vector<1x49xf32>
    %108 = vector.extract_strided_slice %76 {offsets = [31, 0], sizes = [1, 49], strides = [1, 1]} : vector<32x49xf32> to vector<1x49xf32>
    %109 = tpu.concatenate %77, %78, %79, %80, %81, %82, %83, %84, %85, %86, %87, %88, %89, %90, %91, %92 in 1 : vector<1x49xf32>, vector<1x49xf32>, vector<1x49xf32>, vector<1x49xf32>, vector<1x49xf32>, vector<1x49xf32>, vector<1x49xf32>, vector<1x49xf32>, vector<1x49xf32>, vector<1x49xf32>, vector<1x49xf32>, vector<1x49xf32>, vector<1x49xf32>, vector<1x49xf32>, vector<1x49xf32>, vector<1x49xf32> -> vector<1x784xf32>
    %110 = tpu.concatenate %93, %94, %95, %96, %97, %98, %99, %100, %101, %102, %103, %104, %105, %106, %107, %108 in 1 : vector<1x49xf32>, vector<1x49xf32>, vector<1x49xf32>, vector<1x49xf32>, vector<1x49xf32>, vector<1x49xf32>, vector<1x49xf32>, vector<1x49xf32>, vector<1x49xf32>, vector<1x49xf32>, vector<1x49xf32>, vector<1x49xf32>, vector<1x49xf32>, vector<1x49xf32>, vector<1x49xf32>, vector<1x49xf32> -> vector<1x784xf32>
    %111 = tpu.concatenate %109, %110 in 1 : vector<1x784xf32>, vector<1x784xf32> -> vector<1x1568xf32>
    %112 = vector.extract_strided_slice %67 {offsets = [0, 64], sizes = [32, 64], strides = [1, 1]} : vector<32x128xf32> to vector<32x64xf32>
    %113 = vector.extract_strided_slice %112 {offsets = [0, 0], sizes = [32, 7], strides = [1, 1]} : vector<32x64xf32> to vector<32x7xf32>
    %114 = vector.extract_strided_slice %112 {offsets = [0, 8], sizes = [32, 7], strides = [1, 1]} : vector<32x64xf32> to vector<32x7xf32>
    %115 = vector.extract_strided_slice %112 {offsets = [0, 16], sizes = [32, 7], strides = [1, 1]} : vector<32x64xf32> to vector<32x7xf32>
    %116 = vector.extract_strided_slice %112 {offsets = [0, 24], sizes = [32, 7], strides = [1, 1]} : vector<32x64xf32> to vector<32x7xf32>
    %117 = vector.extract_strided_slice %112 {offsets = [0, 32], sizes = [32, 7], strides = [1, 1]} : vector<32x64xf32> to vector<32x7xf32>
    %118 = vector.extract_strided_slice %112 {offsets = [0, 40], sizes = [32, 7], strides = [1, 1]} : vector<32x64xf32> to vector<32x7xf32>
    %119 = vector.extract_strided_slice %112 {offsets = [0, 48], sizes = [32, 7], strides = [1, 1]} : vector<32x64xf32> to vector<32x7xf32>
    %120 = tpu.concatenate %113, %114, %115, %116, %117, %118, %119 in 1 : vector<32x7xf32>, vector<32x7xf32>, vector<32x7xf32>, vector<32x7xf32>, vector<32x7xf32>, vector<32x7xf32>, vector<32x7xf32> -> vector<32x49xf32>
    %121 = vector.extract_strided_slice %120 {offsets = [0, 0], sizes = [1, 49], strides = [1, 1]} : vector<32x49xf32> to vector<1x49xf32>
    %122 = vector.extract_strided_slice %120 {offsets = [1, 0], sizes = [1, 49], strides = [1, 1]} : vector<32x49xf32> to vector<1x49xf32>
    %123 = vector.extract_strided_slice %120 {offsets = [2, 0], sizes = [1, 49], strides = [1, 1]} : vector<32x49xf32> to vector<1x49xf32>
    %124 = vector.extract_strided_slice %120 {offsets = [3, 0], sizes = [1, 49], strides = [1, 1]} : vector<32x49xf32> to vector<1x49xf32>
    %125 = vector.extract_strided_slice %120 {offsets = [4, 0], sizes = [1, 49], strides = [1, 1]} : vector<32x49xf32> to vector<1x49xf32>
    %126 = vector.extract_strided_slice %120 {offsets = [5, 0], sizes = [1, 49], strides = [1, 1]} : vector<32x49xf32> to vector<1x49xf32>
    %127 = vector.extract_strided_slice %120 {offsets = [6, 0], sizes = [1, 49], strides = [1, 1]} : vector<32x49xf32> to vector<1x49xf32>
    %128 = vector.extract_strided_slice %120 {offsets = [7, 0], sizes = [1, 49], strides = [1, 1]} : vector<32x49xf32> to vector<1x49xf32>
    %129 = vector.extract_strided_slice %120 {offsets = [8, 0], sizes = [1, 49], strides = [1, 1]} : vector<32x49xf32> to vector<1x49xf32>
    %130 = vector.extract_strided_slice %120 {offsets = [9, 0], sizes = [1, 49], strides = [1, 1]} : vector<32x49xf32> to vector<1x49xf32>
    %131 = vector.extract_strided_slice %120 {offsets = [10, 0], sizes = [1, 49], strides = [1, 1]} : vector<32x49xf32> to vector<1x49xf32>
    %132 = vector.extract_strided_slice %120 {offsets = [11, 0], sizes = [1, 49], strides = [1, 1]} : vector<32x49xf32> to vector<1x49xf32>
    %133 = vector.extract_strided_slice %120 {offsets = [12, 0], sizes = [1, 49], strides = [1, 1]} : vector<32x49xf32> to vector<1x49xf32>
    %134 = vector.extract_strided_slice %120 {offsets = [13, 0], sizes = [1, 49], strides = [1, 1]} : vector<32x49xf32> to vector<1x49xf32>
    %135 = vector.extract_strided_slice %120 {offsets = [14, 0], sizes = [1, 49], strides = [1, 1]} : vector<32x49xf32> to vector<1x49xf32>
    %136 = vector.extract_strided_slice %120 {offsets = [15, 0], sizes = [1, 49], strides = [1, 1]} : vector<32x49xf32> to vector<1x49xf32>
    %137 = vector.extract_strided_slice %120 {offsets = [16, 0], sizes = [1, 49], strides = [1, 1]} : vector<32x49xf32> to vector<1x49xf32>
    %138 = vector.extract_strided_slice %120 {offsets = [17, 0], sizes = [1, 49], strides = [1, 1]} : vector<32x49xf32> to vector<1x49xf32>
    %139 = vector.extract_strided_slice %120 {offsets = [18, 0], sizes = [1, 49], strides = [1, 1]} : vector<32x49xf32> to vector<1x49xf32>
    %140 = vector.extract_strided_slice %120 {offsets = [19, 0], sizes = [1, 49], strides = [1, 1]} : vector<32x49xf32> to vector<1x49xf32>
    %141 = vector.extract_strided_slice %120 {offsets = [20, 0], sizes = [1, 49], strides = [1, 1]} : vector<32x49xf32> to vector<1x49xf32>
    %142 = vector.extract_strided_slice %120 {offsets = [21, 0], sizes = [1, 49], strides = [1, 1]} : vector<32x49xf32> to vector<1x49xf32>
    %143 = vector.extract_strided_slice %120 {offsets = [22, 0], sizes = [1, 49], strides = [1, 1]} : vector<32x49xf32> to vector<1x49xf32>
    %144 = vector.extract_strided_slice %120 {offsets = [23, 0], sizes = [1, 49], strides = [1, 1]} : vector<32x49xf32> to vector<1x49xf32>
    %145 = vector.extract_strided_slice %120 {offsets = [24, 0], sizes = [1, 49], strides = [1, 1]} : vector<32x49xf32> to vector<1x49xf32>
    %146 = vector.extract_strided_slice %120 {offsets = [25, 0], sizes = [1, 49], strides = [1, 1]} : vector<32x49xf32> to vector<1x49xf32>
    %147 = vector.extract_strided_slice %120 {offsets = [26, 0], sizes = [1, 49], strides = [1, 1]} : vector<32x49xf32> to vector<1x49xf32>
    %148 = vector.extract_strided_slice %120 {offsets = [27, 0], sizes = [1, 49], strides = [1, 1]} : vector<32x49xf32> to vector<1x49xf32>
    %149 = vector.extract_strided_slice %120 {offsets = [28, 0], sizes = [1, 49], strides = [1, 1]} : vector<32x49xf32> to vector<1x49xf32>
    %150 = vector.extract_strided_slice %120 {offsets = [29, 0], sizes = [1, 49], strides = [1, 1]} : vector<32x49xf32> to vector<1x49xf32>
    %151 = vector.extract_strided_slice %120 {offsets = [30, 0], sizes = [1, 49], strides = [1, 1]} : vector<32x49xf32> to vector<1x49xf32>
    %152 = vector.extract_strided_slice %120 {offsets = [31, 0], sizes = [1, 49], strides = [1, 1]} : vector<32x49xf32> to vector<1x49xf32>
    %153 = tpu.concatenate %121, %122, %123, %124, %125, %126, %127, %128, %129, %130, %131, %132, %133, %134, %135, %136 in 1 : vector<1x49xf32>, vector<1x49xf32>, vector<1x49xf32>, vector<1x49xf32>, vector<1x49xf32>, vector<1x49xf32>, vector<1x49xf32>, vector<1x49xf32>, vector<1x49xf32>, vector<1x49xf32>, vector<1x49xf32>, vector<1x49xf32>, vector<1x49xf32>, vector<1x49xf32>, vector<1x49xf32>, vector<1x49xf32> -> vector<1x784xf32>
    %154 = tpu.concatenate %137, %138, %139, %140, %141, %142, %143, %144, %145, %146, %147, %148, %149, %150, %151, %152 in 1 : vector<1x49xf32>, vector<1x49xf32>, vector<1x49xf32>, vector<1x49xf32>, vector<1x49xf32>, vector<1x49xf32>, vector<1x49xf32>, vector<1x49xf32>, vector<1x49xf32>, vector<1x49xf32>, vector<1x49xf32>, vector<1x49xf32>, vector<1x49xf32>, vector<1x49xf32>, vector<1x49xf32>, vector<1x49xf32> -> vector<1x784xf32>
    %155 = tpu.concatenate %153, %154 in 1 : vector<1x784xf32>, vector<1x784xf32> -> vector<1x1568xf32>
    %156 = tpu.concatenate %111, %155 in 0 : vector<1x1568xf32>, vector<1x1568xf32> -> vector<2x1568xf32>
    %c0_14 = arith.constant 0 : index
    %c0_15 = arith.constant 0 : index
    %157 = vector.load %arg10[%c0_14, %c0_15] : memref<2x1568xf32, #tpu.memory_space<vmem>>, vector<2x1568xf32>
    tpu.vector_store %arg10[%c0_14, %c0_15], %156 {strides = array<i32>} : memref<2x1568xf32, #tpu.memory_space<vmem>>, vector<2x1568xf32>,
    %c0_16 = arith.constant 0 : index
    %c0_17 = arith.constant 0 : index
    %158 = vector.load %arg7[%c0_16, %c0_17] : memref<1568x10xf32, #tpu.memory_space<vmem>>, vector<1568x10xf32>
    %cst_18 = arith.constant dense<0.000000e+00> : vector<2x10xf32>
    %159 = tpu.matmul %156, %158, %cst_18 {dimension_numbers = #tpu.dot_dimension_numbers<[1], [0], [0], [1], [0, 0, 1, 1], [], []>} : vector<2x1568xf32>, vector<1568x10xf32>, vector<2x10xf32> -> vector<2x10xf32>
    %c0_19 = arith.constant 0 : index
    %c0_20 = arith.constant 0 : index
    %160 = vector.load %arg8[%c0_19, %c0_20] : memref<1x10xf32, #tpu.memory_space<vmem>>, vector<1x10xf32>
    %161 = vector.broadcast %160 : vector<1x10xf32> to vector<2x10xf32>
    %162 = arith.addf %159, %161 : vector<2x10xf32>
    %c0_21 = arith.constant 0 : index
    %c0_22 = arith.constant 0 : index
    %163 = vector.load %arg9[%c0_21, %c0_22] : memref<2x10xf32, #tpu.memory_space<vmem>>, vector<2x10xf32>
    tpu.vector_store %arg9[%c0_21, %c0_22], %162 {strides = array<i32>} : memref<2x10xf32, #tpu.memory_space<vmem>>, vector<2x10xf32>,
    return
  }
  func.func @transform_0(%arg0: i32) -> (i32, i32) {
    %c0_i32 = arith.constant 0 : i32
    %c0_i32_0 = arith.constant 0 : i32
    %c0_i32_1 = arith.constant 0 : i32
    return %c0_i32, %c0_i32_0 : i32, i32
  }
  func.func @transform_1(%arg0: i32) -> (i32, i32) {
    %c0_i32 = arith.constant 0 : i32
    %c0_i32_0 = arith.constant 0 : i32
    %c0_i32_1 = arith.constant 0 : i32
    return %c0_i32, %c0_i32_0 : i32, i32
  }
  func.func @transform_2(%arg0: i32) -> (i32, i32) {
    %c0_i32 = arith.constant 0 : i32
    %c0_i32_0 = arith.constant 0 : i32
    %c0_i32_1 = arith.constant 0 : i32
    return %c0_i32, %c0_i32_0 : i32, i32
  }
  func.func @transform_3(%arg0: i32) -> (i32, i32) {
    %c0_i32 = arith.constant 0 : i32
    %c0_i32_0 = arith.constant 0 : i32
    %c0_i32_1 = arith.constant 0 : i32
    return %c0_i32, %c0_i32_0 : i32, i32
  }
  func.func @transform_4(%arg0: i32) -> (i32, i32) {
    %c0_i32 = arith.constant 0 : i32
    %c0_i32_0 = arith.constant 0 : i32
    %c0_i32_1 = arith.constant 0 : i32
    return %c0_i32, %c0_i32_0 : i32, i32
  }
  func.func @transform_5(%arg0: i32) -> (i32, i32) {
    %c0_i32 = arith.constant 0 : i32
    %c0_i32_0 = arith.constant 0 : i32
    %c0_i32_1 = arith.constant 0 : i32
    return %c0_i32, %c0_i32_0 : i32, i32
  }
  func.func @transform_6(%arg0: i32) -> (i32, i32) {
    %c0_i32 = arith.constant 0 : i32
    %c0_i32_0 = arith.constant 0 : i32
    %c0_i32_1 = arith.constant 0 : i32
    return %c0_i32, %c0_i32_0 : i32, i32
  }
  func.func @transform_7(%arg0: i32) -> (i32, i32) {
    %c0_i32 = arith.constant 0 : i32
    %c0_i32_0 = arith.constant 0 : i32
    %c0_i32_1 = arith.constant 0 : i32
    return %c0_i32, %c0_i32_0 : i32, i32
  }
  func.func @transform_8(%arg0: i32) -> (i32, i32) {
    %c0_i32 = arith.constant 0 : i32
    %c0_i32_0 = arith.constant 0 : i32
    %c0_i32_1 = arith.constant 0 : i32
    return %c0_i32, %c0_i32_0 : i32, i32
  }
  func.func @transform_9(%arg0: i32) -> (i32, i32) {
    %c0_i32 = arith.constant 0 : i32
    %c0_i32_0 = arith.constant 0 : i32
    %c0_i32_1 = arith.constant 0 : i32
    return %c0_i32, %c0_i32_0 : i32, i32
  }
}

</mosaic_0001>

<llo_original>
// kernel: tile.8
$region0: #{tile.8}
  #allocation0 [shape = 's32[1]{0}', space=sflag, size = 0x4, scoped, tag = 'scoped memory for tile.8']
  %s0 = inlined_call_operand.vmem [shape: f32[16], index: 0, kind: input, shape index: {}]
  %s1 = inlined_call_operand.vmem [shape: f32[4,16], index: 1, kind: output, shape index: {}]
  // Predicated region
  $region2: #{tile.8} parent=0 // pred_check
    _
  $region3: #{tile.8} parent=0 // pred_check_branch
    %3 = sbr.rel (0) target = $region5
  $region4: #{tile.8} parent=0 // pred_region
    _
  $region5: #{tile.8} parent=0 // pred_fallthru
    _
  %v4 = vld [vmem:[%s0] ss:$0 sm:$0xff]
  %5 = vst [vmem:[%s1] sm:$0xf] %v4

// kernel: tile.0
$region0: #{tile.0}
  %s0 = inlined_call_operand.vmem [shape: f32[4,16], index: 0, kind: input, shape index: {}]
  %s1 = inlined_call_operand.vmem [shape: f32[64,1], index: 1, kind: output, shape index: {}]
  $region1: #{tile.0} parent=0
    #allocation0 [shape = 'u8[4096]{0}', space=vmem, size = 0x1000, scoped, tag = 'scoped mem for input reshape']
    %s3 = sshllo.u32 0, 4
    %v4 = vld [vmem:[%s0] sm:%s3]
    %5 = vst [vmem:[#allocation0] sm:%s3] %v4
    %v6 = vld [vmem:[#allocation0] sm:$0xf]
    %vm7 = vcmask 7168
    %8 = vst.msk [vmem:[%s1] ss:$16 sm:$0x3] %vm7, %v6
    %9 = vst.msk [vmem:[%s1] ss:$16 sm:$0xc] %vm7, %v6
    %v10 = vld [vmem:[#allocation0] sm:$0xf]
    %11 = vrot.lane.b32.xlu0 %v10, 127
    %v12 = vpop.permute.xlu0 %11
    %vm13 = vcmask 7168
    %s14 = scalar_lea.vmem %s1, 1
    %15 = vst.msk [vmem:[%s14] ss:$16 sm:$0x3] %vm13, %v12
    %s16 = scalar_lea.vmem %s1, 1
    %17 = vst.msk [vmem:[%s16] ss:$16 sm:$0xc] %vm13, %v12
    %v18 = vld [vmem:[#allocation0] sm:$0xf]
    %19 = vrot.lane.b32.xlu0 %v18, 126
    %v20 = vpop.permute.xlu0 %19
    %vm21 = vcmask 7168
    %s22 = scalar_lea.vmem %s1, 2
    %23 = vst.msk [vmem:[%s22] ss:$16 sm:$0x3] %vm21, %v20
    %s24 = scalar_lea.vmem %s1, 2
    %25 = vst.msk [vmem:[%s24] ss:$16 sm:$0xc] %vm21, %v20
    %v26 = vld [vmem:[#allocation0] sm:$0xf]
    %27 = vrot.lane.b32.xlu0 %v26, 125
    %v28 = vpop.permute.xlu0 %27
    %vm29 = vcmask 7168
    %s30 = scalar_lea.vmem %s1, 3
    %31 = vst.msk [vmem:[%s30] ss:$16 sm:$0x3] %vm29, %v28
    %s32 = scalar_lea.vmem %s1, 3
    %33 = vst.msk [vmem:[%s32] ss:$16 sm:$0xc] %vm29, %v28
    %v34 = vld [vmem:[#allocation0] sm:$0xf]
    %35 = vrot.lane.b32.xlu0 %v34, 124
    %v36 = vpop.permute.xlu0 %35
    %vm37 = vcmask 7168
    %s38 = scalar_lea.vmem %s1, 4
    %39 = vst.msk [vmem:[%s38] ss:$16 sm:$0x3] %vm37, %v36
    %s40 = scalar_lea.vmem %s1, 4
    %41 = vst.msk [vmem:[%s40] ss:$16 sm:$0xc] %vm37, %v36
    %v42 = vld [vmem:[#allocation0] sm:$0xf]
    %43 = vrot.lane.b32.xlu0 %v42, 123
    %v44 = vpop.permute.xlu0 %43
    %vm45 = vcmask 7168
    %s46 = scalar_lea.vmem %s1, 5
    %47 = vst.msk [vmem:[%s46] ss:$16 sm:$0x3] %vm45, %v44
    %s48 = scalar_lea.vmem %s1, 5
    %49 = vst.msk [vmem:[%s48] ss:$16 sm:$0xc] %vm45, %v44
    %v50 = vld [vmem:[#allocation0] sm:$0xf]
    %51 = vrot.lane.b32.xlu0 %v50, 122
    %v52 = vpop.permute.xlu0 %51
    %vm53 = vcmask 7168
    %s54 = scalar_lea.vmem %s1, 6
    %55 = vst.msk [vmem:[%s54] ss:$16 sm:$0x3] %vm53, %v52
    %s56 = scalar_lea.vmem %s1, 6
    %57 = vst.msk [vmem:[%s56] ss:$16 sm:$0xc] %vm53, %v52
    %v58 = vld [vmem:[#allocation0] sm:$0xf]
    %59 = vrot.lane.b32.xlu0 %v58, 121
    %v60 = vpop.permute.xlu0 %59
    %vm61 = vcmask 7168
    %s62 = scalar_lea.vmem %s1, 7
    %63 = vst.msk [vmem:[%s62] ss:$16 sm:$0x3] %vm61, %v60
    %s64 = scalar_lea.vmem %s1, 7
    %65 = vst.msk [vmem:[%s64] ss:$16 sm:$0xc] %vm61, %v60
    %v66 = vld [vmem:[#allocation0] sm:$0xf]
    %67 = vrot.lane.b32.xlu0 %v66, 120
    %v68 = vpop.permute.xlu0 %67
    %vm69 = vcmask 7168
    %s70 = scalar_lea.vmem %s1, 8
    %71 = vst.msk [vmem:[%s70] ss:$16 sm:$0x3] %vm69, %v68
    %s72 = scalar_lea.vmem %s1, 8
    %73 = vst.msk [vmem:[%s72] ss:$16 sm:$0xc] %vm69, %v68
    %v74 = vld [vmem:[#allocation0] sm:$0xf]
    %75 = vrot.lane.b32.xlu0 %v74, 119
    %v76 = vpop.permute.xlu0 %75
    %vm77 = vcmask 7168
    %s78 = scalar_lea.vmem %s1, 9
    %79 = vst.msk [vmem:[%s78] ss:$16 sm:$0x3] %vm77, %v76
    %s80 = scalar_lea.vmem %s1, 9
    %81 = vst.msk [vmem:[%s80] ss:$16 sm:$0xc] %vm77, %v76
    %v82 = vld [vmem:[#allocation0] sm:$0xf]
    %83 = vrot.lane.b32.xlu0 %v82, 118
    %v84 = vpop.permute.xlu0 %83
    %vm85 = vcmask 7168
    %s86 = scalar_lea.vmem %s1, 10
    %87 = vst.msk [vmem:[%s86] ss:$16 sm:$0x3] %vm85, %v84
    %s88 = scalar_lea.vmem %s1, 10
    %89 = vst.msk [vmem:[%s88] ss:$16 sm:$0xc] %vm85, %v84
    %v90 = vld [vmem:[#allocation0] sm:$0xf]
    %91 = vrot.lane.b32.xlu0 %v90, 117
    %v92 = vpop.permute.xlu0 %91
    %vm93 = vcmask 7168
    %s94 = scalar_lea.vmem %s1, 11
    %95 = vst.msk [vmem:[%s94] ss:$16 sm:$0x3] %vm93, %v92
    %s96 = scalar_lea.vmem %s1, 11
    %97 = vst.msk [vmem:[%s96] ss:$16 sm:$0xc] %vm93, %v92
    %v98 = vld [vmem:[#allocation0] sm:$0xf]
    %99 = vrot.lane.b32.xlu0 %v98, 116
    %v100 = vpop.permute.xlu0 %99
    %vm101 = vcmask 7168
    %s102 = scalar_lea.vmem %s1, 12
    %103 = vst.msk [vmem:[%s102] ss:$16 sm:$0x3] %vm101, %v100
    %s104 = scalar_lea.vmem %s1, 12
    %105 = vst.msk [vmem:[%s104] ss:$16 sm:$0xc] %vm101, %v100
    %v106 = vld [vmem:[#allocation0] sm:$0xf]
    %107 = vrot.lane.b32.xlu0 %v106, 115
    %v108 = vpop.permute.xlu0 %107
    %vm109 = vcmask 7168
    %s110 = scalar_lea.vmem %s1, 13
    %111 = vst.msk [vmem:[%s110] ss:$16 sm:$0x3] %vm109, %v108
    %s112 = scalar_lea.vmem %s1, 13
    %113 = vst.msk [vmem:[%s112] ss:$16 sm:$0xc] %vm109, %v108
    %v114 = vld [vmem:[#allocation0] sm:$0xf]
    %115 = vrot.lane.b32.xlu0 %v114, 114
    %v116 = vpop.permute.xlu0 %115
    %vm117 = vcmask 7168
    %s118 = scalar_lea.vmem %s1, 14
    %119 = vst.msk [vmem:[%s118] ss:$16 sm:$0x3] %vm117, %v116
    %s120 = scalar_lea.vmem %s1, 14
    %121 = vst.msk [vmem:[%s120] ss:$16 sm:$0xc] %vm117, %v116
    %v122 = vld [vmem:[#allocation0] sm:$0xf]
    %123 = vrot.lane.b32.xlu0 %v122, 113
    %v124 = vpop.permute.xlu0 %123
    %vm125 = vcmask 7168
    %s126 = scalar_lea.vmem %s1, 15
    %127 = vst.msk [vmem:[%s126] ss:$16 sm:$0x3] %vm125, %v124
    %s128 = scalar_lea.vmem %s1, 15
    %129 = vst.msk [vmem:[%s128] ss:$16 sm:$0xc] %vm125, %v124

// kernel: model_forward.1
$region0: #{model_forward.1}
  #allocation0 [shape = 'u32[]', space=smem, size = 0x4, offset = 0x4, fixed_abs, tag = 'smem constant byte address 0x4 - core index']
  #allocation1 [shape = 'u32[144,128]{1,0:T(1,128)}', space=vmem, size = 0x12000, scoped, tag = 'internal scratch']
  %s0 = inlined_call_operand.vmem [shape: bf16[16,128], index: 0, kind: input, shape index: {}]
  %s1 = inlined_call_operand.vmem [shape: bf16[256,64], index: 1, kind: input, shape index: {}]
  %s2 = inlined_call_operand.vmem [shape: f32[64,1], index: 2, kind: input, shape index: {}]
  %s3 = inlined_call_operand.vmem [shape: f32[1,128], index: 3, kind: input, shape index: {}]
  %s4 = inlined_call_operand.vmem [shape: bf16[128,576], index: 4, kind: input, shape index: {}]
  %s5 = inlined_call_operand.vmem [shape: f32[32,1], index: 5, kind: input, shape index: {}]
  %s6 = inlined_call_operand.vmem [shape: f32[1568,10], index: 6, kind: input, shape index: {}]
  %s7 = inlined_call_operand.vmem [shape: f32[1,10], index: 7, kind: input, shape index: {}]
  %s8 = inlined_call_operand.hbm [shape: f32[2,10], index: 8, kind: output, shape index: {0}]
  %s9 = inlined_call_operand.hbm [shape: f32[2,1568], index: 9, kind: output, shape index: {1}]
  %10 = xla_tuple %s8, %s9
  %s11 = sld [smem:[#allocation0]]
  $region50: #{model_forward.1} parent=0
    _
  %s13 = ssub.s32 1, %s11
  %s14 = scalar_select 0, %s13, %s11
  $region1: #{model_forward.1} parent=0
    #allocation2 [shape = 'u8[1024]{0}', space=vmem, size = 0x400, scoped, tag = 'output window, operand 0, single buffered']
    #allocation3 [shape = 's32[1]{0}', space=sflag, size = 0x4, scoped, tag = 'scoped memory for model_forward.1']
    #allocation4 [shape = 'u8[13312]{0}', space=vmem, size = 0x3400, scoped, tag = 'output window, operand 1, single buffered']
    #allocation5 [shape = 's32[1]{0}', space=sflag, size = 0x4, scoped, tag = 'scoped memory for model_forward.1']
    %15 = vsyncpa [#allocation3], 0
    %16 = vsyncpa [#allocation5], 0
    // Predicated region
    $region2: #{model_forward.1} parent=1 // pred_check
      _
    $region3: #{model_forward.1} parent=1 // pred_check_branch
      %18 = sbr.rel (0) target = $region5
    $region4: #{model_forward.1} parent=1 // pred_region
      _
    $region5: #{model_forward.1} parent=1 // pred_fallthru
      _
    // Predicated region
    $region6: #{model_forward.1} parent=1 // pred_check
      _
    $region7: #{model_forward.1} parent=1 // pred_check_branch
      %20 = sbr.rel (0) target = $region9
    $region8: #{model_forward.1} parent=1 // pred_region
      _
    $region9: #{model_forward.1} parent=1 // pred_fallthru
      _
    // Predicated region
    $region10: #{model_forward.1} parent=1 // pred_check
      _
    $region11: #{model_forward.1} parent=1 // pred_check_branch
      %22 = sbr.rel (0) target = $region13
    $region12: #{model_forward.1} parent=1 // pred_region
      _
    $region13: #{model_forward.1} parent=1 // pred_fallthru
      _
    // Predicated region
    $region14: #{model_forward.1} parent=1 // pred_check
      _
    $region15: #{model_forward.1} parent=1 // pred_check_branch
      %24 = sbr.rel (0) target = $region17
    $region16: #{model_forward.1} parent=1 // pred_region
      _
    $region17: #{model_forward.1} parent=1 // pred_fallthru
      _
    // Predicated region
    $region18: #{model_forward.1} parent=1 // pred_check
      _
    $region19: #{model_forward.1} parent=1 // pred_check_branch
      %26 = sbr.rel (0) target = $region21
    $region20: #{model_forward.1} parent=1 // pred_region
      _
    $region21: #{model_forward.1} parent=1 // pred_fallthru
      _
    // Predicated region
    $region22: #{model_forward.1} parent=1 // pred_check
      _
    $region23: #{model_forward.1} parent=1 // pred_check_branch
      %28 = sbr.rel (0) target = $region25
    $region24: #{model_forward.1} parent=1 // pred_region
      _
    $region25: #{model_forward.1} parent=1 // pred_fallthru
      _
    // Predicated region
    $region26: #{model_forward.1} parent=1 // pred_check
      _
    $region27: #{model_forward.1} parent=1 // pred_check_branch
      %30 = sbr.rel (0) target = $region29
    $region28: #{model_forward.1} parent=1 // pred_region
      _
    $region29: #{model_forward.1} parent=1 // pred_fallthru
      _
    // Predicated region
    $region30: #{model_forward.1} parent=1 // pred_check
      _
    $region31: #{model_forward.1} parent=1 // pred_check_branch
      %32 = sbr.rel (0) target = $region33
    $region32: #{model_forward.1} parent=1 // pred_region
      _
    $region33: #{model_forward.1} parent=1 // pred_fallthru
      _
    %v34 = vld [vmem:[%s0] sm:$0xf]
    %v35 = vld [vmem:[%s0 + $0x4] sm:$0xf]
    %v38 = vunpack.c.l.b16 %v34
    %v39 = vunpack.c.l.b16 %v35
    %v40 = vpack.c.b16 %v39, %v38
    %41 = vrot.lane.b32.xlu0 %v40, 127
    %v42 = vpop.permute.xlu0 %41
    %45 = vrot.lane.b32.xlu0 %v40, 120
    %v46 = vpop.permute.xlu0 %45
    %49 = vrot.lane.b32.xlu0 %v40, 119
    %v50 = vpop.permute.xlu0 %49
    %v54 = vld [vmem:[%s1] sm:$0xf]
    %v55 = vld [vmem:[%s1 + $0x4] sm:$0xf]
    %v56 = vld [vmem:[%s1 + $0x8] sm:$0xf]
    %v57 = vld [vmem:[%s1 + $0xc] sm:$0xf]
    %v58 = vld [vmem:[%s1 + $0x10] sm:$0xf]
    %v59 = vld [vmem:[%s1 + $0x14] sm:$0xf]
    %v60 = vld [vmem:[%s1 + $0x18] sm:$0xf]
    %v61 = vld [vmem:[%s1 + $0x1c] sm:$0xf]
    %v62 = vld [vmem:[%s1 + $0x20] sm:$0xf]
    %v63 = vld [vmem:[%s1 + $0x24] sm:$0xf]
    %v64 = vld [vmem:[%s1 + $0x28] sm:$0xf]
    %v65 = vld [vmem:[%s1 + $0x2c] sm:$0xf]
    %v66 = vld [vmem:[%s1 + $0x30] sm:$0xf]
    %v67 = vld [vmem:[%s1 + $0x34] sm:$0xf]
    %v68 = vld [vmem:[%s1 + $0x38] sm:$0xf]
    %v69 = vld [vmem:[%s1 + $0x3c] sm:$0xf]
    %v70 = vld [vmem:[%s1 + $0x40] sm:$0xf]
    %v71 = vld [vmem:[%s1 + $0x44] sm:$0xf]
    %v72 = vld [vmem:[%s1 + $0x48] sm:$0xf]
    %v73 = vld [vmem:[%s1 + $0x4c] sm:$0xf]
    %v74 = vld [vmem:[%s1 + $0x50] sm:$0xf]
    %v75 = vld [vmem:[%s1 + $0x54] sm:$0xf]
    %v76 = vld [vmem:[%s1 + $0x58] sm:$0xf]
    %v77 = vld [vmem:[%s1 + $0x5c] sm:$0xf]
    %v78 = vld [vmem:[%s1 + $0x60] sm:$0xf]
    %v79 = vld [vmem:[%s1 + $0x64] sm:$0xf]
    %v80 = vld [vmem:[%s1 + $0x68] sm:$0xf]
    %v81 = vld [vmem:[%s1 + $0x6c] sm:$0xf]
    %v82 = vld [vmem:[%s1 + $0x70] sm:$0xf]
    %v83 = vld [vmem:[%s1 + $0x74] sm:$0xf]
    %v84 = vld [vmem:[%s1 + $0x78] sm:$0xf]
    %v85 = vld [vmem:[%s1 + $0x7c] sm:$0xf]
    %v118 = vunpack.c.l.b16 %v54
    %v119 = vunpack.c.l.b16 %v55
    %v120 = vunpack.c.l.b16 %v56
    %v121 = vunpack.c.l.b16 %v57
    %v122 = vunpack.c.l.b16 %v58
    %v123 = vunpack.c.l.b16 %v59
    %v124 = vunpack.c.l.b16 %v60
    %v125 = vunpack.c.l.b16 %v61
    %v126 = vunpack.c.l.b16 %v62
    %v127 = vunpack.c.l.b16 %v63
    %v128 = vunpack.c.l.b16 %v64
    %v129 = vunpack.c.l.b16 %v65
    %v130 = vunpack.c.l.b16 %v66
    %v131 = vunpack.c.l.b16 %v67
    %v132 = vunpack.c.l.b16 %v68
    %v133 = vunpack.c.l.b16 %v69
    %v134 = vunpack.c.l.b16 %v70
    %v135 = vunpack.c.l.b16 %v71
    %v136 = vunpack.c.l.b16 %v72
    %v137 = vunpack.c.l.b16 %v73
    %v138 = vunpack.c.l.b16 %v74
    %v139 = vunpack.c.l.b16 %v75
    %v140 = vunpack.c.l.b16 %v76
    %v141 = vunpack.c.l.b16 %v77
    %v142 = vunpack.c.l.b16 %v78
    %v143 = vunpack.c.l.b16 %v79
    %v144 = vunpack.c.l.b16 %v80
    %v145 = vunpack.c.l.b16 %v81
    %v146 = vunpack.c.l.b16 %v82
    %v147 = vunpack.c.l.b16 %v83
    %v148 = vunpack.c.l.b16 %v84
    %v149 = vunpack.c.l.b16 %v85
    %v150 = vpack.c.b16 %v119, %v118
    %v151 = vpack.c.b16 %v121, %v120
    %v152 = vpack.c.b16 %v123, %v122
    %v153 = vpack.c.b16 %v125, %v124
    %v154 = vpack.c.b16 %v127, %v126
    %v155 = vpack.c.b16 %v129, %v128
    %v156 = vpack.c.b16 %v131, %v130
    %v157 = vpack.c.b16 %v133, %v132
    %v158 = vpack.c.b16 %v135, %v134
    %v159 = vpack.c.b16 %v137, %v136
    %v160 = vpack.c.b16 %v139, %v138
    %v161 = vpack.c.b16 %v141, %v140
    %v162 = vpack.c.b16 %v143, %v142
    %v163 = vpack.c.b16 %v145, %v144
    %v164 = vpack.c.b16 %v147, %v146
    %v165 = vpack.c.b16 %v149, %v148
    %vm166 = vcmask 523264
    %v168 = vsel %vm166, %v150, 0
    %v171 = vsel %vm166, %v151, 0
    %v174 = vsel %vm166, %v152, 0
    %v177 = vsel %vm166, %v153, 0
    %v180 = vsel %vm166, %v154, 0
    %v183 = vsel %vm166, %v155, 0
    %v186 = vsel %vm166, %v156, 0
    %v189 = vsel %vm166, %v157, 0
    %v192 = vsel %vm166, %v158, 0
    %v195 = vsel %vm166, %v159, 0
    %v198 = vsel %vm166, %v160, 0
    %v201 = vsel %vm166, %v161, 0
    %v204 = vsel %vm166, %v162, 0
    %v207 = vsel %vm166, %v163, 0
    %v210 = vsel %vm166, %v164, 0
    %v213 = vsel %vm166, %v165, 0
    %215 = vmatprep.subr.bf16.mxu0 0
    %216 = vmatpush1.bf16.msra.mxu0 %v40
    %217 = vmatprep.subr.bf16.mxu0 0
    %218 = vmatpush1.bf16.msra.mxu0 %v42
    %219 = vmatprep.subr.bf16.mxu0 0
    %220 = vmatpush1.bf16.msra.mxu0 %v46
    %221 = vmatprep.subr.bf16.mxu0 0
    %222 = vmatpush1.bf16.msra.mxu0 %v50
    %223 = vmatprep.subr.bf16.mxu0 0
    %224 = vmatpush1.bf16.msra.mxu0 0
    %225 = vmatprep.subr.bf16.mxu0 0
    %226 = vmatpush1.bf16.msra.mxu0 0
    %227 = vmatprep.subr.bf16.mxu0 0
    %228 = vmatpush1.bf16.msra.mxu0 0
    %229 = vmatprep.subr.bf16.mxu0 0
    %230 = vmatpush1.bf16.msra.mxu0 0
    %231 = vmatprep.subr.bf16.mxu0 0
    %232 = vmatpush1.bf16.msra.mxu0 0
    %233 = vmatprep.subr.bf16.mxu0 0
    %234 = vmatpush1.bf16.msra.mxu0 0
    %235 = vmatprep.subr.bf16.mxu0 0
    %236 = vmatpush1.bf16.msra.mxu0 0
    %237 = vmatprep.subr.bf16.mxu0 0
    %238 = vmatpush1.bf16.msra.mxu0 0
    %239 = vmatprep.subr.bf16.mxu0 0
    %240 = vmatpush1.bf16.msra.mxu0 0
    %241 = vmatprep.subr.bf16.mxu0 0
    %242 = vmatpush1.bf16.msra.mxu0 0
    %243 = vmatprep.subr.bf16.mxu0 0
    %244 = vmatpush1.bf16.msra.mxu0 0
    %245 = vmatprep.subr.bf16.mxu0 0
    %246 = vmatpush1.bf16.msra.mxu0 0
    %247 = vmatprep.mubr.bf16.mxu0 0
    %248 = vmatmul.mubr.bf16.gmra.mrb[0].mxu0 %v168
    %v249 = vpop.f32.mrb[0].mxu0
    %v250 = vadd.f32 0.0, %v249
    %v251 = vpop.f32.mrb[0].mxu0
    %v252 = vpop.f32.mrb[0].mxu0
    %v253 = vadd.f32 0.0, %v252
    %v254 = vpop.f32.mrb[0].mxu0
    %255 = vmatprep.mubr.bf16.mxu0 0
    %256 = vmatmul.mubr.bf16.gmra.mrb[0].mxu0 %v171
    %v257 = vpop.f32.mrb[0].mxu0
    %v258 = vadd.f32 0.0, %v257
    %v259 = vpop.f32.mrb[0].mxu0
    %v260 = vpop.f32.mrb[0].mxu0
    %v261 = vadd.f32 0.0, %v260
    %v262 = vpop.f32.mrb[0].mxu0
    %263 = vmatprep.mubr.bf16.mxu0 0
    %264 = vmatmul.mubr.bf16.gmra.mrb[0].mxu0 %v174
    %v265 = vpop.f32.mrb[0].mxu0
    %v266 = vadd.f32 0.0, %v265
    %v267 = vpop.f32.mrb[0].mxu0
    %v268 = vpop.f32.mrb[0].mxu0
    %v269 = vadd.f32 0.0, %v268
    %v270 = vpop.f32.mrb[0].mxu0
    %271 = vmatprep.mubr.bf16.mxu0 0
    %272 = vmatmul.mubr.bf16.gmra.mrb[0].mxu0 %v177
    %v273 = vpop.f32.mrb[0].mxu0
    %v274 = vadd.f32 0.0, %v273
    %v275 = vpop.f32.mrb[0].mxu0
    %v276 = vpop.f32.mrb[0].mxu0
    %v277 = vadd.f32 0.0, %v276
    %v278 = vpop.f32.mrb[0].mxu0
    %279 = vmatprep.mubr.bf16.mxu0 0
    %280 = vmatmul.mubr.bf16.gmra.mrb[0].mxu0 %v180
    %v281 = vpop.f32.mrb[0].mxu0
    %v282 = vadd.f32 0.0, %v281
    %v283 = vpop.f32.mrb[0].mxu0
    %v284 = vpop.f32.mrb[0].mxu0
    %v285 = vadd.f32 0.0, %v284
    %v286 = vpop.f32.mrb[0].mxu0
    %287 = vmatprep.mubr.bf16.mxu0 0
    %288 = vmatmul.mubr.bf16.gmra.mrb[0].mxu0 %v183
    %v289 = vpop.f32.mrb[0].mxu0
    %v290 = vadd.f32 0.0, %v289
    %v291 = vpop.f32.mrb[0].mxu0
    %v292 = vpop.f32.mrb[0].mxu0
    %v293 = vadd.f32 0.0, %v292
    %v294 = vpop.f32.mrb[0].mxu0
    %295 = vmatprep.mubr.bf16.mxu0 0
    %296 = vmatmul.mubr.bf16.gmra.mrb[0].mxu0 %v186
    %v297 = vpop.f32.mrb[0].mxu0
    %v298 = vadd.f32 0.0, %v297
    %v299 = vpop.f32.mrb[0].mxu0
    %v300 = vpop.f32.mrb[0].mxu0
    %v301 = vadd.f32 0.0, %v300
    %v302 = vpop.f32.mrb[0].mxu0
    %303 = vmatprep.mubr.bf16.mxu0 0
    %304 = vmatmul.mubr.bf16.gmra.mrb[0].mxu0 %v189
    %v305 = vpop.f32.mrb[0].mxu0
    %v306 = vadd.f32 0.0, %v305
    %v307 = vpop.f32.mrb[0].mxu0
    %v308 = vpop.f32.mrb[0].mxu0
    %v309 = vadd.f32 0.0, %v308
    %v310 = vpop.f32.mrb[0].mxu0
    %311 = vmatprep.mubr.bf16.mxu0 0
    %312 = vmatmul.mubr.bf16.gmra.mrb[0].mxu0 %v192
    %v313 = vpop.f32.mrb[0].mxu0
    %v314 = vadd.f32 0.0, %v313
    %v315 = vpop.f32.mrb[0].mxu0
    %v316 = vpop.f32.mrb[0].mxu0
    %v317 = vadd.f32 0.0, %v316
    %v318 = vpop.f32.mrb[0].mxu0
    %319 = vmatprep.mubr.bf16.mxu0 0
    %320 = vmatmul.mubr.bf16.gmra.mrb[0].mxu0 %v195
    %v321 = vpop.f32.mrb[0].mxu0
    %v322 = vadd.f32 0.0, %v321
    %v323 = vpop.f32.mrb[0].mxu0
    %v324 = vpop.f32.mrb[0].mxu0
    %v325 = vadd.f32 0.0, %v324
    %v326 = vpop.f32.mrb[0].mxu0
    %327 = vmatprep.mubr.bf16.mxu0 0
    %328 = vmatmul.mubr.bf16.gmra.mrb[0].mxu0 %v198
    %v329 = vpop.f32.mrb[0].mxu0
    %v330 = vadd.f32 0.0, %v329
    %v331 = vpop.f32.mrb[0].mxu0
    %v332 = vpop.f32.mrb[0].mxu0
    %v333 = vadd.f32 0.0, %v332
    %v334 = vpop.f32.mrb[0].mxu0
    %335 = vmatprep.mubr.bf16.mxu0 0
    %336 = vmatmul.mubr.bf16.gmra.mrb[0].mxu0 %v201
    %v337 = vpop.f32.mrb[0].mxu0
    %v338 = vadd.f32 0.0, %v337
    %v339 = vpop.f32.mrb[0].mxu0
    %v340 = vpop.f32.mrb[0].mxu0
    %v341 = vadd.f32 0.0, %v340
    %v342 = vpop.f32.mrb[0].mxu0
    %343 = vmatprep.mubr.bf16.mxu0 0
    %344 = vmatmul.mubr.bf16.gmra.mrb[0].mxu0 %v204
    %v345 = vpop.f32.mrb[0].mxu0
    %v346 = vadd.f32 0.0, %v345
    %v347 = vpop.f32.mrb[0].mxu0
    %v348 = vpop.f32.mrb[0].mxu0
    %v349 = vadd.f32 0.0, %v348
    %v350 = vpop.f32.mrb[0].mxu0
    %351 = vmatprep.mubr.bf16.mxu0 0
    %352 = vmatmul.mubr.bf16.gmra.mrb[0].mxu0 %v207
    %v353 = vpop.f32.mrb[0].mxu0
    %v354 = vadd.f32 0.0, %v353
    %v355 = vpop.f32.mrb[0].mxu0
    %v356 = vpop.f32.mrb[0].mxu0
    %v357 = vadd.f32 0.0, %v356
    %v358 = vpop.f32.mrb[0].mxu0
    %359 = vmatprep.mubr.bf16.mxu0 0
    %360 = vmatmul.mubr.bf16.gmra.mrb[0].mxu0 %v210
    %v361 = vpop.f32.mrb[0].mxu0
    %v362 = vadd.f32 0.0, %v361
    %v363 = vpop.f32.mrb[0].mxu0
    %v364 = vpop.f32.mrb[0].mxu0
    %v365 = vadd.f32 0.0, %v364
    %v366 = vpop.f32.mrb[0].mxu0
    %367 = vmatprep.mubr.bf16.mxu0 0
    %368 = vmatmul.mubr.bf16.gmra.mrb[0].mxu0 %v213
    %v369 = vpop.f32.mrb[0].mxu0
    %v370 = vadd.f32 0.0, %v369
    %v371 = vpop.f32.mrb[0].mxu0
    %v372 = vpop.f32.mrb[0].mxu0
    %v373 = vadd.f32 0.0, %v372
    %v374 = vpop.f32.mrb[0].mxu0
    %375 = vdwg.mxu0
    %v376 = vmax.f32 %v250, %v282
    %v377 = vmax.f32 %v253, %v285
    %v378 = vmax.f32 %v258, %v290
    %v379 = vmax.f32 %v261, %v293
    %v380 = vmax.f32 %v266, %v298
    %v381 = vmax.f32 %v269, %v301
    %v382 = vmax.f32 %v274, %v306
    %v383 = vmax.f32 %v277, %v309
    %v384 = vmax.f32 %v314, %v346
    %v385 = vmax.f32 %v317, %v349
    %v386 = vmax.f32 %v322, %v354
    %v387 = vmax.f32 %v325, %v357
    %v388 = vmax.f32 %v330, %v362
    %v389 = vmax.f32 %v333, %v365
    %v390 = vmax.f32 %v338, %v370
    %v391 = vmax.f32 %v341, %v373
    %v392 = vmax.f32 %v376, %v384
    %v393 = vmax.f32 %v377, %v385
    %v394 = vmax.f32 %v378, %v386
    %v395 = vmax.f32 %v379, %v387
    %v396 = vmax.f32 %v380, %v388
    %v397 = vmax.f32 %v381, %v389
    %v398 = vmax.f32 %v382, %v390
    %v399 = vmax.f32 %v383, %v391
    %v400 = vld [vmem:[%s2] sm:$0xff]
    %v401 = vld [vmem:[%s2 + $0x8] sm:$0xff]
    %v402 = vld [vmem:[%s2 + $0x10] sm:$0xff]
    %v403 = vld [vmem:[%s2 + $0x18] sm:$0xff]
    %v404 = vld [vmem:[%s2 + $0x20] sm:$0xff]
    %v405 = vld [vmem:[%s2 + $0x28] sm:$0xff]
    %v406 = vld [vmem:[%s2 + $0x30] sm:$0xff]
    %v407 = vld [vmem:[%s2 + $0x38] sm:$0xff]
    %409 = vset.pattern.permute.xlu0 0
    %410 = vperm.xlu0 %409, %v400
    %v411 = vpop.permute.xlu0 %410
    %414 = vset.pattern.permute.xlu0 0
    %415 = vperm.xlu0 %414, %v401
    %v416 = vpop.permute.xlu0 %415
    %419 = vset.pattern.permute.xlu0 0
    %420 = vperm.xlu0 %419, %v402
    %v421 = vpop.permute.xlu0 %420
    %424 = vset.pattern.permute.xlu0 0
    %425 = vperm.xlu0 %424, %v403
    %v426 = vpop.permute.xlu0 %425
    %429 = vset.pattern.permute.xlu0 0
    %430 = vperm.xlu0 %429, %v404
    %v431 = vpop.permute.xlu0 %430
    %434 = vset.pattern.permute.xlu0 0
    %435 = vperm.xlu0 %434, %v405
    %v436 = vpop.permute.xlu0 %435
    %439 = vset.pattern.permute.xlu0 0
    %440 = vperm.xlu0 %439, %v406
    %v441 = vpop.permute.xlu0 %440
    %444 = vset.pattern.permute.xlu0 0
    %445 = vperm.xlu0 %444, %v407
    %v446 = vpop.permute.xlu0 %445
    %v448 = vadd.f32 %v392, %v411
    %v449 = vadd.f32 %v393, %v416
    %v450 = vadd.f32 %v394, %v421
    %v451 = vadd.f32 %v395, %v426
    %v452 = vadd.f32 %v396, %v431
    %v453 = vadd.f32 %v397, %v436
    %v454 = vadd.f32 %v398, %v441
    %v455 = vadd.f32 %v399, %v446
    %v456 = vmax.f32 %v448, 0.0
    %v457 = vmax.f32 %v449, 0.0
    %v458 = vmax.f32 %v450, 0.0
    %v459 = vmax.f32 %v451, 0.0
    %v460 = vmax.f32 %v452, 0.0
    %v461 = vmax.f32 %v453, 0.0
    %v462 = vmax.f32 %v454, 0.0
    %v463 = vmax.f32 %v455, 0.0
    %v464 = vld [vmem:[%s3] sm:$0x1]
    %v466 = vlaneseq
    %v467 = vshrl.u32 %v466, 7
    %v468 = vsub.s32 0, %v467
    %v469 = vrot.slane %v464, %v468
    %v471 = vmul.f32 %v456, %v469
    %v472 = vmul.f32 %v457, %v469
    %v473 = vmul.f32 %v458, %v469
    %v474 = vmul.f32 %v459, %v469
    %v475 = vmul.f32 %v460, %v469
    %v476 = vmul.f32 %v461, %v469
    %v477 = vmul.f32 %v462, %v469
    %v478 = vmul.f32 %v463, %v469
    %v479 = vpack.c.bf16 %v472, %v471
    %v480 = vpack.c.bf16 %v474, %v473
    %v481 = vpack.c.bf16 %v476, %v475
    %v482 = vpack.c.bf16 %v478, %v477
    %487 = vrot.lane.b32.xlu0 %v479, 9
    %v488 = vpop.permute.xlu0 %487
    %489 = vrot.lane.b32.xlu0 %v480, 9
    %v490 = vpop.permute.xlu0 %489
    %491 = vrot.lane.b32.xlu0 %v481, 9
    %v492 = vpop.permute.xlu0 %491
    %493 = vrot.lane.b32.xlu0 %v482, 9
    %v494 = vpop.permute.xlu0 %493
    %503 = vrot.lane.b32.xlu0 %v479, 8
    %v504 = vpop.permute.xlu0 %503
    %505 = vrot.lane.b32.xlu0 %v480, 8
    %v506 = vpop.permute.xlu0 %505
    %507 = vrot.lane.b32.xlu0 %v481, 8
    %v508 = vpop.permute.xlu0 %507
    %509 = vrot.lane.b32.xlu0 %v482, 8
    %v510 = vpop.permute.xlu0 %509
    %vm511 = vcmask 64512
    %520 = vrot.lane.b32.xlu0 %v479, 7
    %v521 = vpop.permute.xlu0 %520
    %522 = vrot.lane.b32.xlu0 %v480, 7
    %v523 = vpop.permute.xlu0 %522
    %524 = vrot.lane.b32.xlu0 %v481, 7
    %v525 = vpop.permute.xlu0 %524
    %526 = vrot.lane.b32.xlu0 %v482, 7
    %v527 = vpop.permute.xlu0 %526
    %vm528 = vcmask 56320
    %537 = vrot.lane.b32.xlu0 %v479, 1
    %v538 = vpop.permute.xlu0 %537
    %539 = vrot.lane.b32.xlu0 %v480, 1
    %v540 = vpop.permute.xlu0 %539
    %541 = vrot.lane.b32.xlu0 %v481, 1
    %v542 = vpop.permute.xlu0 %541
    %543 = vrot.lane.b32.xlu0 %v482, 1
    %v544 = vpop.permute.xlu0 %543
    %553 = vrot.lane.b32.xlu0 %v479, 127
    %v554 = vpop.permute.xlu0 %553
    %555 = vrot.lane.b32.xlu0 %v480, 127
    %v556 = vpop.permute.xlu0 %555
    %557 = vrot.lane.b32.xlu0 %v481, 127
    %v558 = vpop.permute.xlu0 %557
    %559 = vrot.lane.b32.xlu0 %v482, 127
    %v560 = vpop.permute.xlu0 %559
    %569 = vrot.lane.b32.xlu0 %v479, 121
    %v570 = vpop.permute.xlu0 %569
    %571 = vrot.lane.b32.xlu0 %v480, 121
    %v572 = vpop.permute.xlu0 %571
    %573 = vrot.lane.b32.xlu0 %v481, 121
    %v574 = vpop.permute.xlu0 %573
    %575 = vrot.lane.b32.xlu0 %v482, 121
    %v576 = vpop.permute.xlu0 %575
    %585 = vrot.lane.b32.xlu0 %v479, 120
    %v586 = vpop.permute.xlu0 %585
    %587 = vrot.lane.b32.xlu0 %v480, 120
    %v588 = vpop.permute.xlu0 %587
    %589 = vrot.lane.b32.xlu0 %v481, 120
    %v590 = vpop.permute.xlu0 %589
    %591 = vrot.lane.b32.xlu0 %v482, 120
    %v592 = vpop.permute.xlu0 %591
    %601 = vrot.lane.b32.xlu0 %v479, 119
    %v602 = vpop.permute.xlu0 %601
    %603 = vrot.lane.b32.xlu0 %v480, 119
    %v604 = vpop.permute.xlu0 %603
    %605 = vrot.lane.b32.xlu0 %v481, 119
    %v606 = vpop.permute.xlu0 %605
    %607 = vrot.lane.b32.xlu0 %v482, 119
    %v608 = vpop.permute.xlu0 %607
    %v617 = vld [vmem:[%s4] sm:$0xff]
    %v618 = vld [vmem:[%s4 + $0x8] sm:$0xff]
    %v619 = vld [vmem:[%s4 + $0x10] sm:$0xf]
    %v620 = vld [vmem:[%s4 + $0x14] sm:$0xff]
    %v621 = vld [vmem:[%s4 + $0x1c] sm:$0xff]
    %v622 = vld [vmem:[%s4 + $0x24] sm:$0xf]
    %v623 = vld [vmem:[%s4 + $0x28] sm:$0xff]
    %v624 = vld [vmem:[%s4 + $0x30] sm:$0xff]
    %v625 = vld [vmem:[%s4 + $0x38] sm:$0xf]
    %v626 = vld [vmem:[%s4 + $0x3c] sm:$0xff]
    %v627 = vld [vmem:[%s4 + $0x44] sm:$0xff]
    %v628 = vld [vmem:[%s4 + $0x4c] sm:$0xf]
    %v629 = vld [vmem:[%s4 + $0x50] sm:$0xff]
    %v630 = vld [vmem:[%s4 + $0x58] sm:$0xff]
    %v631 = vld [vmem:[%s4 + $0x60] sm:$0xf]
    %v632 = vld [vmem:[%s4 + $0x64] sm:$0xff]
    %v633 = vld [vmem:[%s4 + $0x6c] sm:$0xff]
    %v634 = vld [vmem:[%s4 + $0x74] sm:$0xf]
    %v635 = vld [vmem:[%s4 + $0x78] sm:$0xff]
    %v636 = vld [vmem:[%s4 + $0x80] sm:$0xff]
    %v637 = vld [vmem:[%s4 + $0x88] sm:$0xf]
    %v638 = vld [vmem:[%s4 + $0x8c] sm:$0xff]
    %v639 = vld [vmem:[%s4 + $0x94] sm:$0xff]
    %v640 = vld [vmem:[%s4 + $0x9c] sm:$0xf]
    %v641 = vld [vmem:[%s4 + $0xa0] sm:$0xff]
    %v642 = vld [vmem:[%s4 + $0xa8] sm:$0xff]
    %v643 = vld [vmem:[%s4 + $0xb0] sm:$0xf]
    %v644 = vld [vmem:[%s4 + $0xb4] sm:$0xff]
    %v645 = vld [vmem:[%s4 + $0xbc] sm:$0xff]
    %v646 = vld [vmem:[%s4 + $0xc4] sm:$0xf]
    %v647 = vld [vmem:[%s4 + $0xc8] sm:$0xff]
    %v648 = vld [vmem:[%s4 + $0xd0] sm:$0xff]
    %v649 = vld [vmem:[%s4 + $0xd8] sm:$0xf]
    %v650 = vld [vmem:[%s4 + $0xdc] sm:$0xff]
    %v651 = vld [vmem:[%s4 + $0xe4] sm:$0xff]
    %v652 = vld [vmem:[%s4 + $0xec] sm:$0xf]
    %v653 = vld [vmem:[%s4 + $0xf0] sm:$0xff]
    %v654 = vld [vmem:[%s4 + $0xf8] sm:$0xff]
    %v655 = vld [vmem:[%s4 + $0x100] sm:$0xf]
    %v656 = vld [vmem:[%s4 + $0x104] sm:$0xff]
    %v657 = vld [vmem:[%s4 + $0x10c] sm:$0xff]
    %v658 = vld [vmem:[%s4 + $0x114] sm:$0xf]
    %v659 = vld [vmem:[%s4 + $0x118] sm:$0xff]
    %v660 = vld [vmem:[%s4 + $0x120] sm:$0xff]
    %v661 = vld [vmem:[%s4 + $0x128] sm:$0xf]
    %v662 = vld [vmem:[%s4 + $0x12c] sm:$0xff]
    %v663 = vld [vmem:[%s4 + $0x134] sm:$0xff]
    %v664 = vld [vmem:[%s4 + $0x13c] sm:$0xf]
    %v713 = vunpack.c.l.b16 %v617
    %v714 = vunpack.c.h.b16 %v617
    %v715 = vunpack.c.l.b16 %v618
    %v716 = vunpack.c.h.b16 %v618
    %v717 = vunpack.c.l.b16 %v619
    %v718 = vunpack.c.l.b16 %v620
    %v719 = vunpack.c.h.b16 %v620
    %v720 = vunpack.c.l.b16 %v621
    %v721 = vunpack.c.h.b16 %v621
    %v722 = vunpack.c.l.b16 %v622
    %v723 = vunpack.c.l.b16 %v623
    %v724 = vunpack.c.h.b16 %v623
    %v725 = vunpack.c.l.b16 %v624
    %v726 = vunpack.c.h.b16 %v624
    %v727 = vunpack.c.l.b16 %v625
    %v728 = vunpack.c.l.b16 %v626
    %v729 = vunpack.c.h.b16 %v626
    %v730 = vunpack.c.l.b16 %v627
    %v731 = vunpack.c.h.b16 %v627
    %v732 = vunpack.c.l.b16 %v628
    %v733 = vunpack.c.l.b16 %v629
    %v734 = vunpack.c.h.b16 %v629
    %v735 = vunpack.c.l.b16 %v630
    %v736 = vunpack.c.h.b16 %v630
    %v737 = vunpack.c.l.b16 %v631
    %v738 = vunpack.c.l.b16 %v632
    %v739 = vunpack.c.h.b16 %v632
    %v740 = vunpack.c.l.b16 %v633
    %v741 = vunpack.c.h.b16 %v633
    %v742 = vunpack.c.l.b16 %v634
    %v743 = vunpack.c.l.b16 %v635
    %v744 = vunpack.c.h.b16 %v635
    %v745 = vunpack.c.l.b16 %v636
    %v746 = vunpack.c.h.b16 %v636
    %v747 = vunpack.c.l.b16 %v637
    %v748 = vunpack.c.l.b16 %v638
    %v749 = vunpack.c.h.b16 %v638
    %v750 = vunpack.c.l.b16 %v639
    %v751 = vunpack.c.h.b16 %v639
    %v752 = vunpack.c.l.b16 %v640
    %v753 = vunpack.c.l.b16 %v641
    %v754 = vunpack.c.h.b16 %v641
    %v755 = vunpack.c.l.b16 %v642
    %v756 = vunpack.c.h.b16 %v642
    %v757 = vunpack.c.l.b16 %v643
    %v758 = vunpack.c.l.b16 %v644
    %v759 = vunpack.c.h.b16 %v644
    %v760 = vunpack.c.l.b16 %v645
    %v761 = vunpack.c.h.b16 %v645
    %v762 = vunpack.c.l.b16 %v646
    %v763 = vunpack.c.l.b16 %v647
    %v764 = vunpack.c.h.b16 %v647
    %v765 = vunpack.c.l.b16 %v648
    %v766 = vunpack.c.h.b16 %v648
    %v767 = vunpack.c.l.b16 %v649
    %v768 = vunpack.c.l.b16 %v650
    %v769 = vunpack.c.h.b16 %v650
    %v770 = vunpack.c.l.b16 %v651
    %v771 = vunpack.c.h.b16 %v651
    %v772 = vunpack.c.l.b16 %v652
    %v773 = vunpack.c.l.b16 %v653
    %v774 = vunpack.c.h.b16 %v653
    %v775 = vunpack.c.l.b16 %v654
    %v776 = vunpack.c.h.b16 %v654
    %v777 = vunpack.c.l.b16 %v655
    %v778 = vunpack.c.l.b16 %v656
    %v779 = vunpack.c.h.b16 %v656
    %v780 = vunpack.c.l.b16 %v657
    %v781 = vunpack.c.h.b16 %v657
    %v782 = vunpack.c.l.b16 %v658
    %v783 = vunpack.c.l.b16 %v659
    %v784 = vunpack.c.h.b16 %v659
    %v785 = vunpack.c.l.b16 %v660
    %v786 = vunpack.c.h.b16 %v660
    %v787 = vunpack.c.l.b16 %v661
    %v788 = vunpack.c.l.b16 %v662
    %v789 = vunpack.c.h.b16 %v662
    %v790 = vunpack.c.l.b16 %v663
    %v791 = vunpack.c.h.b16 %v663
    %v792 = vunpack.c.l.b16 %v664
    %v793 = vpack.c.b16 %v718, %v713
    %v794 = vpack.c.b16 %v719, %v714
    %v795 = vpack.c.b16 %v720, %v715
    %v796 = vpack.c.b16 %v721, %v716
    %v797 = vpack.c.b16 %v722, %v717
    %v798 = vpack.c.b16 %v728, %v723
    %v799 = vpack.c.b16 %v729, %v724
    %v800 = vpack.c.b16 %v730, %v725
    %v801 = vpack.c.b16 %v731, %v726
    %v802 = vpack.c.b16 %v732, %v727
    %v803 = vpack.c.b16 %v738, %v733
    %v804 = vpack.c.b16 %v739, %v734
    %v805 = vpack.c.b16 %v740, %v735
    %v806 = vpack.c.b16 %v741, %v736
    %v807 = vpack.c.b16 %v742, %v737
    %v808 = vpack.c.b16 %v748, %v743
    %v809 = vpack.c.b16 %v749, %v744
    %v810 = vpack.c.b16 %v750, %v745
    %v811 = vpack.c.b16 %v751, %v746
    %v812 = vpack.c.b16 %v752, %v747
    %v813 = vpack.c.b16 %v758, %v753
    %v814 = vpack.c.b16 %v759, %v754
    %v815 = vpack.c.b16 %v760, %v755
    %v816 = vpack.c.b16 %v761, %v756
    %v817 = vpack.c.b16 %v762, %v757
    %v818 = vpack.c.b16 %v768, %v763
    %v819 = vpack.c.b16 %v769, %v764
    %v820 = vpack.c.b16 %v770, %v765
    %v821 = vpack.c.b16 %v771, %v766
    %v822 = vpack.c.b16 %v772, %v767
    %v823 = vpack.c.b16 %v778, %v773
    %v824 = vpack.c.b16 %v779, %v774
    %v825 = vpack.c.b16 %v780, %v775
    %v826 = vpack.c.b16 %v781, %v776
    %v827 = vpack.c.b16 %v782, %v777
    %v828 = vpack.c.b16 %v788, %v783
    %v829 = vpack.c.b16 %v789, %v784
    %v830 = vpack.c.b16 %v790, %v785
    %v831 = vpack.c.b16 %v791, %v786
    %v832 = vpack.c.b16 %v792, %v787
    %v866 = vsel %vm166, %v797, 0
    %v869 = vsel %vm166, %v802, 0
    %v872 = vsel %vm166, %v807, 0
    %v875 = vsel %vm166, %v812, 0
    %v878 = vsel %vm166, %v817, 0
    %v881 = vsel %vm166, %v822, 0
    %v884 = vsel %vm166, %v827, 0
    %v887 = vsel %vm166, %v832, 0
    %889 = vmatprep.subr.bf16.mxu0 0
    %890 = vmatpush1.bf16.msra.mxu0 %v488
    %891 = vmatprep.subr.bf16.mxu0 0
    %892 = vmatpush1.bf16.msra.mxu0 %v490
    %893 = vmatprep.subr.bf16.mxu0 0
    %894 = vmatpush1.bf16.msra.mxu0 %v492
    %895 = vmatprep.subr.bf16.mxu0 0
    %896 = vmatpush1.bf16.msra.mxu0 %v494
    %897 = vmatprep.subr.bf16.mxu0 0
    %898 = vmatpush1.bf16.msra.mxu0 %v504
    %899 = vmatprep.subr.bf16.mxu0 0
    %900 = vmatpush1.bf16.msra.mxu0 %v506
    %901 = vmatprep.subr.bf16.mxu0 0
    %902 = vmatpush1.bf16.msra.mxu0 %v508
    %903 = vmatprep.subr.bf16.mxu0 0
    %904 = vmatpush1.bf16.msra.mxu0 %v510
    %905 = vmatprep.subr.bf16.mxu0 0
    %906 = vmatpush1.bf16.msra.mxu0 %v521
    %907 = vmatprep.subr.bf16.mxu0 0
    %908 = vmatpush1.bf16.msra.mxu0 %v523
    %909 = vmatprep.subr.bf16.mxu0 0
    %910 = vmatpush1.bf16.msra.mxu0 %v525
    %911 = vmatprep.subr.bf16.mxu0 0
    %912 = vmatpush1.bf16.msra.mxu0 %v527
    %913 = vmatprep.subr.bf16.mxu0 0
    %914 = vmatpush1.bf16.msra.mxu0 %v538
    %915 = vmatprep.subr.bf16.mxu0 0
    %916 = vmatpush1.bf16.msra.mxu0 %v540
    %917 = vmatprep.subr.bf16.mxu0 0
    %918 = vmatpush1.bf16.msra.mxu0 %v542
    %919 = vmatprep.subr.bf16.mxu0 0
    %920 = vmatpush1.bf16.msra.mxu0 %v544
    %921 = vmatprep.mubr.bf16.mxu0 %v794
    %922 = vmatmul.mubr.bf16.gmra.mrb[0].mxu0 %v793
    %v923 = vpop.f32.mrb[0].mxu0
    %v924 = vadd.f32 0.0, %v923
    %v925 = vpop.f32.mrb[0].mxu0
    %v926 = vpop.f32.mrb[0].mxu0
    %v927 = vadd.f32 0.0, %v926
    %v928 = vpop.f32.mrb[0].mxu0
    %929 = vmatprep.mubr.bf16.mxu0 %v799
    %930 = vmatmul.mubr.bf16.gmra.mrb[0].mxu0 %v798
    %v931 = vpop.f32.mrb[0].mxu0
    %v932 = vadd.f32 0.0, %v931
    %v933 = vpop.f32.mrb[0].mxu0
    %v934 = vpop.f32.mrb[0].mxu0
    %v935 = vadd.f32 0.0, %v934
    %v936 = vpop.f32.mrb[0].mxu0
    %937 = vmatprep.mubr.bf16.mxu0 %v804
    %938 = vmatmul.mubr.bf16.gmra.mrb[0].mxu0 %v803
    %v939 = vpop.f32.mrb[0].mxu0
    %v940 = vadd.f32 0.0, %v939
    %v941 = vpop.f32.mrb[0].mxu0
    %v942 = vpop.f32.mrb[0].mxu0
    %v943 = vadd.f32 0.0, %v942
    %v944 = vpop.f32.mrb[0].mxu0
    %945 = vmatprep.mubr.bf16.mxu0 %v809
    %946 = vmatmul.mubr.bf16.gmra.mrb[0].mxu0 %v808
    %v947 = vpop.f32.mrb[0].mxu0
    %v948 = vadd.f32 0.0, %v947
    %v949 = vpop.f32.mrb[0].mxu0
    %v950 = vpop.f32.mrb[0].mxu0
    %v951 = vadd.f32 0.0, %v950
    %v952 = vpop.f32.mrb[0].mxu0
    %953 = vmatprep.mubr.bf16.mxu0 %v814
    %954 = vmatmul.mubr.bf16.gmra.mrb[0].mxu0 %v813
    %v955 = vpop.f32.mrb[0].mxu0
    %v956 = vadd.f32 0.0, %v955
    %v957 = vpop.f32.mrb[0].mxu0
    %v958 = vpop.f32.mrb[0].mxu0
    %v959 = vadd.f32 0.0, %v958
    %v960 = vpop.f32.mrb[0].mxu0
    %961 = vmatprep.mubr.bf16.mxu0 %v819
    %962 = vmatmul.mubr.bf16.gmra.mrb[0].mxu0 %v818
    %v963 = vpop.f32.mrb[0].mxu0
    %v964 = vadd.f32 0.0, %v963
    %v965 = vpop.f32.mrb[0].mxu0
    %v966 = vpop.f32.mrb[0].mxu0
    %v967 = vadd.f32 0.0, %v966
    %v968 = vpop.f32.mrb[0].mxu0
    %969 = vmatprep.mubr.bf16.mxu0 %v824
    %970 = vmatmul.mubr.bf16.gmra.mrb[0].mxu0 %v823
    %v971 = vpop.f32.mrb[0].mxu0
    %v972 = vadd.f32 0.0, %v971
    %v973 = vpop.f32.mrb[0].mxu0
    %v974 = vpop.f32.mrb[0].mxu0
    %v975 = vadd.f32 0.0, %v974
    %v976 = vpop.f32.mrb[0].mxu0
    %977 = vmatprep.mubr.bf16.mxu0 %v829
    %978 = vmatmul.mubr.bf16.gmra.mrb[0].mxu0 %v828
    %v979 = vpop.f32.mrb[0].mxu0
    %v980 = vadd.f32 0.0, %v979
    %v981 = vpop.f32.mrb[0].mxu0
    %v982 = vpop.f32.mrb[0].mxu0
    %v983 = vadd.f32 0.0, %v982
    %v984 = vpop.f32.mrb[0].mxu0
    %985 = vdwg.mxu0
    %986 = vmatprep.subr.bf16.mxu0 0
    %987 = vmatpush1.bf16.msra.mxu0 %v479
    %988 = vmatprep.subr.bf16.mxu0 0
    %989 = vmatpush1.bf16.msra.mxu0 %v480
    %990 = vmatprep.subr.bf16.mxu0 0
    %991 = vmatpush1.bf16.msra.mxu0 %v481
    %992 = vmatprep.subr.bf16.mxu0 0
    %993 = vmatpush1.bf16.msra.mxu0 %v482
    %994 = vmatprep.subr.bf16.mxu0 0
    %995 = vmatpush1.bf16.msra.mxu0 %v554
    %996 = vmatprep.subr.bf16.mxu0 0
    %997 = vmatpush1.bf16.msra.mxu0 %v556
    %998 = vmatprep.subr.bf16.mxu0 0
    %999 = vmatpush1.bf16.msra.mxu0 %v558
    %1000 = vmatprep.subr.bf16.mxu0 0
    %1001 = vmatpush1.bf16.msra.mxu0 %v560
    %1002 = vmatprep.subr.bf16.mxu0 0
    %1003 = vmatpush1.bf16.msra.mxu0 %v570
    %1004 = vmatprep.subr.bf16.mxu0 0
    %1005 = vmatpush1.bf16.msra.mxu0 %v572
    %1006 = vmatprep.subr.bf16.mxu0 0
    %1007 = vmatpush1.bf16.msra.mxu0 %v574
    %1008 = vmatprep.subr.bf16.mxu0 0
    %1009 = vmatpush1.bf16.msra.mxu0 %v576
    %1010 = vmatprep.subr.bf16.mxu0 0
    %1011 = vmatpush1.bf16.msra.mxu0 %v586
    %1012 = vmatprep.subr.bf16.mxu0 0
    %1013 = vmatpush1.bf16.msra.mxu0 %v588
    %1014 = vmatprep.subr.bf16.mxu0 0
    %1015 = vmatpush1.bf16.msra.mxu0 %v590
    %1016 = vmatprep.subr.bf16.mxu0 0
    %1017 = vmatpush1.bf16.msra.mxu0 %v592
    %1018 = vmatprep.mubr.bf16.mxu0 %v796
    %1019 = vmatmul.mubr.bf16.gmra.mrb[0].mxu0 %v795
    %v1020 = vpop.f32.mrb[0].mxu0
    %v1021 = vadd.f32 %v924, %v1020
    %v1022 = vpop.f32.mrb[0].mxu0
    %v1023 = vpop.f32.mrb[0].mxu0
    %v1024 = vadd.f32 %v927, %v1023
    %v1025 = vpop.f32.mrb[0].mxu0
    %1026 = vmatprep.mubr.bf16.mxu0 %v801
    %1027 = vmatmul.mubr.bf16.gmra.mrb[0].mxu0 %v800
    %v1028 = vpop.f32.mrb[0].mxu0
    %v1029 = vadd.f32 %v932, %v1028
    %v1030 = vpop.f32.mrb[0].mxu0
    %v1031 = vpop.f32.mrb[0].mxu0
    %v1032 = vadd.f32 %v935, %v1031
    %v1033 = vpop.f32.mrb[0].mxu0
    %1034 = vmatprep.mubr.bf16.mxu0 %v806
    %1035 = vmatmul.mubr.bf16.gmra.mrb[0].mxu0 %v805
    %v1036 = vpop.f32.mrb[0].mxu0
    %v1037 = vadd.f32 %v940, %v1036
    %v1038 = vpop.f32.mrb[0].mxu0
    %v1039 = vpop.f32.mrb[0].mxu0
    %v1040 = vadd.f32 %v943, %v1039
    %v1041 = vpop.f32.mrb[0].mxu0
    %1042 = vmatprep.mubr.bf16.mxu0 %v811
    %1043 = vmatmul.mubr.bf16.gmra.mrb[0].mxu0 %v810
    %v1044 = vpop.f32.mrb[0].mxu0
    %v1045 = vadd.f32 %v948, %v1044
    %v1046 = vpop.f32.mrb[0].mxu0
    %v1047 = vpop.f32.mrb[0].mxu0
    %v1048 = vadd.f32 %v951, %v1047
    %v1049 = vpop.f32.mrb[0].mxu0
    %1050 = vmatprep.mubr.bf16.mxu0 %v816
    %1051 = vmatmul.mubr.bf16.gmra.mrb[0].mxu0 %v815
    %v1052 = vpop.f32.mrb[0].mxu0
    %v1053 = vadd.f32 %v956, %v1052
    %v1054 = vpop.f32.mrb[0].mxu0
    %v1055 = vpop.f32.mrb[0].mxu0
    %v1056 = vadd.f32 %v959, %v1055
    %v1057 = vpop.f32.mrb[0].mxu0
    %1058 = vmatprep.mubr.bf16.mxu0 %v821
    %1059 = vmatmul.mubr.bf16.gmra.mrb[0].mxu0 %v820
    %v1060 = vpop.f32.mrb[0].mxu0
    %v1061 = vadd.f32 %v964, %v1060
    %v1062 = vpop.f32.mrb[0].mxu0
    %v1063 = vpop.f32.mrb[0].mxu0
    %v1064 = vadd.f32 %v967, %v1063
    %v1065 = vpop.f32.mrb[0].mxu0
    %1066 = vmatprep.mubr.bf16.mxu0 %v826
    %1067 = vmatmul.mubr.bf16.gmra.mrb[0].mxu0 %v825
    %v1068 = vpop.f32.mrb[0].mxu0
    %v1069 = vadd.f32 %v972, %v1068
    %v1070 = vpop.f32.mrb[0].mxu0
    %v1071 = vpop.f32.mrb[0].mxu0
    %v1072 = vadd.f32 %v975, %v1071
    %v1073 = vpop.f32.mrb[0].mxu0
    %1074 = vmatprep.mubr.bf16.mxu0 %v831
    %1075 = vmatmul.mubr.bf16.gmra.mrb[0].mxu0 %v830
    %v1076 = vpop.f32.mrb[0].mxu0
    %v1077 = vadd.f32 %v980, %v1076
    %v1078 = vpop.f32.mrb[0].mxu0
    %v1079 = vpop.f32.mrb[0].mxu0
    %v1080 = vadd.f32 %v983, %v1079
    %v1081 = vpop.f32.mrb[0].mxu0
    %1082 = vdwg.mxu0
    %1083 = vmatprep.subr.bf16.mxu0 0
    %1084 = vmatpush1.bf16.msra.mxu0 %v602
    %1085 = vmatprep.subr.bf16.mxu0 0
    %1086 = vmatpush1.bf16.msra.mxu0 %v604
    %1087 = vmatprep.subr.bf16.mxu0 0
    %1088 = vmatpush1.bf16.msra.mxu0 %v606
    %1089 = vmatprep.subr.bf16.mxu0 0
    %1090 = vmatpush1.bf16.msra.mxu0 %v608
    %1091 = vmatprep.subr.bf16.mxu0 0
    %1092 = vmatpush1.bf16.msra.mxu0 0
    %1093 = vmatprep.subr.bf16.mxu0 0
    %1094 = vmatpush1.bf16.msra.mxu0 0
    %1095 = vmatprep.subr.bf16.mxu0 0
    %1096 = vmatpush1.bf16.msra.mxu0 0
    %1097 = vmatprep.subr.bf16.mxu0 0
    %1098 = vmatpush1.bf16.msra.mxu0 0
    %1099 = vmatprep.subr.bf16.mxu0 0
    %1100 = vmatpush1.bf16.msra.mxu0 0
    %1101 = vmatprep.subr.bf16.mxu0 0
    %1102 = vmatpush1.bf16.msra.mxu0 0
    %1103 = vmatprep.subr.bf16.mxu0 0
    %1104 = vmatpush1.bf16.msra.mxu0 0
    %1105 = vmatprep.subr.bf16.mxu0 0
    %1106 = vmatpush1.bf16.msra.mxu0 0
    %1107 = vmatprep.subr.bf16.mxu0 0
    %1108 = vmatpush1.bf16.msra.mxu0 0
    %1109 = vmatprep.subr.bf16.mxu0 0
    %1110 = vmatpush1.bf16.msra.mxu0 0
    %1111 = vmatprep.subr.bf16.mxu0 0
    %1112 = vmatpush1.bf16.msra.mxu0 0
    %1113 = vmatprep.subr.bf16.mxu0 0
    %1114 = vmatpush1.bf16.msra.mxu0 0
    %1115 = vmatprep.mubr.bf16.mxu0 0
    %1116 = vmatmul.mubr.bf16.gmra.mrb[0].mxu0 %v866
    %v1117 = vpop.f32.mrb[0].mxu0
    %v1118 = vadd.f32 %v1021, %v1117
    %v1119 = vpop.f32.mrb[0].mxu0
    %v1120 = vpop.f32.mrb[0].mxu0
    %v1121 = vadd.f32 %v1024, %v1120
    %v1122 = vpop.f32.mrb[0].mxu0
    %1123 = vmatprep.mubr.bf16.mxu0 0
    %1124 = vmatmul.mubr.bf16.gmra.mrb[0].mxu0 %v869
    %v1125 = vpop.f32.mrb[0].mxu0
    %v1126 = vadd.f32 %v1029, %v1125
    %v1127 = vpop.f32.mrb[0].mxu0
    %v1128 = vpop.f32.mrb[0].mxu0
    %v1129 = vadd.f32 %v1032, %v1128
    %v1130 = vpop.f32.mrb[0].mxu0
    %1131 = vmatprep.mubr.bf16.mxu0 0
    %1132 = vmatmul.mubr.bf16.gmra.mrb[0].mxu0 %v872
    %v1133 = vpop.f32.mrb[0].mxu0
    %v1134 = vadd.f32 %v1037, %v1133
    %v1135 = vpop.f32.mrb[0].mxu0
    %v1136 = vpop.f32.mrb[0].mxu0
    %v1137 = vadd.f32 %v1040, %v1136
    %v1138 = vpop.f32.mrb[0].mxu0
    %1139 = vmatprep.mubr.bf16.mxu0 0
    %1140 = vmatmul.mubr.bf16.gmra.mrb[0].mxu0 %v875
    %v1141 = vpop.f32.mrb[0].mxu0
    %v1142 = vadd.f32 %v1045, %v1141
    %v1143 = vpop.f32.mrb[0].mxu0
    %v1144 = vpop.f32.mrb[0].mxu0
    %v1145 = vadd.f32 %v1048, %v1144
    %v1146 = vpop.f32.mrb[0].mxu0
    %1147 = vmatprep.mubr.bf16.mxu0 0
    %1148 = vmatmul.mubr.bf16.gmra.mrb[0].mxu0 %v878
    %v1149 = vpop.f32.mrb[0].mxu0
    %v1150 = vadd.f32 %v1053, %v1149
    %v1151 = vpop.f32.mrb[0].mxu0
    %v1152 = vpop.f32.mrb[0].mxu0
    %v1153 = vadd.f32 %v1056, %v1152
    %v1154 = vpop.f32.mrb[0].mxu0
    %1155 = vmatprep.mubr.bf16.mxu0 0
    %1156 = vmatmul.mubr.bf16.gmra.mrb[0].mxu0 %v881
    %v1157 = vpop.f32.mrb[0].mxu0
    %v1158 = vadd.f32 %v1061, %v1157
    %v1159 = vpop.f32.mrb[0].mxu0
    %v1160 = vpop.f32.mrb[0].mxu0
    %v1161 = vadd.f32 %v1064, %v1160
    %v1162 = vpop.f32.mrb[0].mxu0
    %1163 = vmatprep.mubr.bf16.mxu0 0
    %1164 = vmatmul.mubr.bf16.gmra.mrb[0].mxu0 %v884
    %v1165 = vpop.f32.mrb[0].mxu0
    %v1166 = vadd.f32 %v1069, %v1165
    %v1167 = vpop.f32.mrb[0].mxu0
    %v1168 = vpop.f32.mrb[0].mxu0
    %v1169 = vadd.f32 %v1072, %v1168
    %v1170 = vpop.f32.mrb[0].mxu0
    %1171 = vmatprep.mubr.bf16.mxu0 0
    %1172 = vmatmul.mubr.bf16.gmra.mrb[0].mxu0 %v887
    %v1173 = vpop.f32.mrb[0].mxu0
    %v1174 = vadd.f32 %v1077, %v1173
    %v1175 = vpop.f32.mrb[0].mxu0
    %v1176 = vpop.f32.mrb[0].mxu0
    %v1177 = vadd.f32 %v1080, %v1176
    %v1178 = vpop.f32.mrb[0].mxu0
    %1179 = vdwg.mxu0
    %v1180 = vmax.f32 %v1118, %v1134
    %v1181 = vmax.f32 %v1121, %v1137
    %v1182 = vmax.f32 %v1126, %v1142
    %v1183 = vmax.f32 %v1129, %v1145
    %v1184 = vmax.f32 %v1150, %v1166
    %v1185 = vmax.f32 %v1153, %v1169
    %v1186 = vmax.f32 %v1158, %v1174
    %v1187 = vmax.f32 %v1161, %v1177
    %v1188 = vmax.f32 %v1180, %v1184
    %v1189 = vmax.f32 %v1181, %v1185
    %v1190 = vmax.f32 %v1182, %v1186
    %v1191 = vmax.f32 %v1183, %v1187
    %v1192 = vld [vmem:[%s5] sm:$0xff]
    %v1193 = vld [vmem:[%s5 + $0x8] sm:$0xff]
    %v1194 = vld [vmem:[%s5 + $0x10] sm:$0xff]
    %v1195 = vld [vmem:[%s5 + $0x18] sm:$0xff]
    %1197 = vset.pattern.permute.xlu0 0
    %1198 = vperm.xlu0 %1197, %v1192
    %v1199 = vpop.permute.xlu0 %1198
    %1202 = vset.pattern.permute.xlu0 0
    %1203 = vperm.xlu0 %1202, %v1193
    %v1204 = vpop.permute.xlu0 %1203
    %1207 = vset.pattern.permute.xlu0 0
    %1208 = vperm.xlu0 %1207, %v1194
    %v1209 = vpop.permute.xlu0 %1208
    %1212 = vset.pattern.permute.xlu0 0
    %1213 = vperm.xlu0 %1212, %v1195
    %v1214 = vpop.permute.xlu0 %1213
    %v1216 = vadd.f32 %v1188, %v1199
    %v1217 = vadd.f32 %v1189, %v1204
    %v1218 = vadd.f32 %v1190, %v1209
    %v1219 = vadd.f32 %v1191, %v1214
    %v1220 = vmax.f32 %v1216, 0.0
    %v1221 = vmax.f32 %v1217, 0.0
    %v1222 = vmax.f32 %v1218, 0.0
    %v1223 = vmax.f32 %v1219, 0.0
    %1228 = vrot.lane.b32.xlu0 %v1220, 127
    %v1229 = vpop.permute.xlu0 %1228
    %1230 = vrot.lane.b32.xlu0 %v1221, 127
    %v1231 = vpop.permute.xlu0 %1230
    %1232 = vrot.lane.b32.xlu0 %v1222, 127
    %v1233 = vpop.permute.xlu0 %1232
    %1234 = vrot.lane.b32.xlu0 %v1223, 127
    %v1235 = vpop.permute.xlu0 %1234
    %1240 = vrot.lane.b32.xlu0 %v1220, 126
    %v1241 = vpop.permute.xlu0 %1240
    %1242 = vrot.lane.b32.xlu0 %v1221, 126
    %v1243 = vpop.permute.xlu0 %1242
    %1244 = vrot.lane.b32.xlu0 %v1222, 126
    %v1245 = vpop.permute.xlu0 %1244
    %1246 = vrot.lane.b32.xlu0 %v1223, 126
    %v1247 = vpop.permute.xlu0 %1246
    %1252 = vrot.lane.b32.xlu0 %v1220, 125
    %v1253 = vpop.permute.xlu0 %1252
    %1254 = vrot.lane.b32.xlu0 %v1221, 125
    %v1255 = vpop.permute.xlu0 %1254
    %1256 = vrot.lane.b32.xlu0 %v1222, 125
    %v1257 = vpop.permute.xlu0 %1256
    %1258 = vrot.lane.b32.xlu0 %v1223, 125
    %v1259 = vpop.permute.xlu0 %1258
    %1264 = vrot.lane.b32.xlu0 %v1220, 124
    %v1265 = vpop.permute.xlu0 %1264
    %1266 = vrot.lane.b32.xlu0 %v1221, 124
    %v1267 = vpop.permute.xlu0 %1266
    %1268 = vrot.lane.b32.xlu0 %v1222, 124
    %v1269 = vpop.permute.xlu0 %1268
    %1270 = vrot.lane.b32.xlu0 %v1223, 124
    %v1271 = vpop.permute.xlu0 %1270
    %1276 = vrot.lane.b32.xlu0 %v1220, 123
    %v1277 = vpop.permute.xlu0 %1276
    %1278 = vrot.lane.b32.xlu0 %v1221, 123
    %v1279 = vpop.permute.xlu0 %1278
    %1280 = vrot.lane.b32.xlu0 %v1222, 123
    %v1281 = vpop.permute.xlu0 %1280
    %1282 = vrot.lane.b32.xlu0 %v1223, 123
    %v1283 = vpop.permute.xlu0 %1282
    %1288 = vrot.lane.b32.xlu0 %v1220, 122
    %v1289 = vpop.permute.xlu0 %1288
    %1290 = vrot.lane.b32.xlu0 %v1221, 122
    %v1291 = vpop.permute.xlu0 %1290
    %1292 = vrot.lane.b32.xlu0 %v1222, 122
    %v1293 = vpop.permute.xlu0 %1292
    %1294 = vrot.lane.b32.xlu0 %v1223, 122
    %v1295 = vpop.permute.xlu0 %1294
    %v1300 = vsel %vm528, %v1220, %v1229
    %v1301 = vsel %vm528, %v1221, %v1231
    %v1302 = vsel %vm528, %v1222, %v1233
    %v1303 = vsel %vm528, %v1223, %v1235
    %vm1304 = vcmask 113664
    %v1305 = vsel %vm1304, %v1300, %v1241
    %v1306 = vsel %vm1304, %v1301, %v1243
    %v1307 = vsel %vm1304, %v1302, %v1245
    %v1308 = vsel %vm1304, %v1303, %v1247
    %vm1309 = vcmask 171008
    %v1310 = vsel %vm1309, %v1305, %v1253
    %v1311 = vsel %vm1309, %v1306, %v1255
    %v1312 = vsel %vm1309, %v1307, %v1257
    %v1313 = vsel %vm1309, %v1308, %v1259
    %vm1314 = vcmask 228352
    %v1315 = vsel %vm1314, %v1310, %v1265
    %v1316 = vsel %vm1314, %v1311, %v1267
    %v1317 = vsel %vm1314, %v1312, %v1269
    %v1318 = vsel %vm1314, %v1313, %v1271
    %vm1319 = vcmask 285696
    %v1320 = vsel %vm1319, %v1315, %v1277
    %v1321 = vsel %vm1319, %v1316, %v1279
    %v1322 = vsel %vm1319, %v1317, %v1281
    %v1323 = vsel %vm1319, %v1318, %v1283
    %vm1324 = vcmask 343040
    %v1325 = vsel %vm1324, %v1320, %v1289
    %v1326 = vsel %vm1324, %v1321, %v1291
    %v1327 = vsel %vm1324, %v1322, %v1293
    %v1328 = vsel %vm1324, %v1323, %v1295
    %v1330 = vrot.slane %v1325, 1
    %1331 = vrot.lane.b32.xlu0 %v1330, 49
    %v1332 = vpop.permute.xlu0 %1331
    %v1334 = vrot.slane %v1325, 2
    %1335 = vrot.lane.b32.xlu0 %v1334, 98
    %v1336 = vpop.permute.xlu0 %1335
    %v1338 = vrot.slane %v1325, 3
    %1339 = vrot.lane.b32.xlu0 %v1338, 19
    %v1340 = vpop.permute.xlu0 %1339
    %v1342 = vrot.slane %v1325, 4
    %1343 = vrot.lane.b32.xlu0 %v1342, 68
    %v1344 = vpop.permute.xlu0 %1343
    %v1346 = vrot.slane %v1325, 5
    %1347 = vrot.lane.b32.xlu0 %v1346, 117
    %v1348 = vpop.permute.xlu0 %1347
    %v1350 = vrot.slane %v1325, 6
    %1351 = vrot.lane.b32.xlu0 %v1350, 38
    %v1352 = vpop.permute.xlu0 %1351
    %v1354 = vrot.slane %v1325, 7
    %1355 = vrot.lane.b32.xlu0 %v1354, 87
    %v1356 = vpop.permute.xlu0 %1355
    %1359 = vrot.lane.b32.xlu0 %v1326, 8
    %v1360 = vpop.permute.xlu0 %1359
    %v1362 = vrot.slane %v1326, 1
    %1363 = vrot.lane.b32.xlu0 %v1362, 57
    %v1364 = vpop.permute.xlu0 %1363
    %v1366 = vrot.slane %v1326, 2
    %1367 = vrot.lane.b32.xlu0 %v1366, 106
    %v1368 = vpop.permute.xlu0 %1367
    %v1370 = vrot.slane %v1326, 3
    %1371 = vrot.lane.b32.xlu0 %v1370, 27
    %v1372 = vpop.permute.xlu0 %1371
    %v1374 = vrot.slane %v1326, 4
    %1375 = vrot.lane.b32.xlu0 %v1374, 76
    %v1376 = vpop.permute.xlu0 %1375
    %v1378 = vrot.slane %v1326, 5
    %1379 = vrot.lane.b32.xlu0 %v1378, 125
    %v1380 = vpop.permute.xlu0 %1379
    %v1382 = vrot.slane %v1326, 6
    %1383 = vrot.lane.b32.xlu0 %v1382, 46
    %v1384 = vpop.permute.xlu0 %1383
    %v1386 = vrot.slane %v1326, 7
    %1387 = vrot.lane.b32.xlu0 %v1386, 95
    %v1388 = vpop.permute.xlu0 %1387
    %vm1390 = vcmask 400384
    %v1391 = vsel %vm1390, %v1325, %v1332
    %vm1392 = vcmask 801792
    %v1393 = vsel %vm1392, %v1391, %v1336
    %vm1394 = vcmask 154624
    %v1395 = vsel %vm1394, %v1336, %v1340
    %vm1396 = vcmask 556032
    %v1397 = vsel %vm1396, %v1395, %v1344
    %vm1398 = vcmask 957440
    %v1399 = vsel %vm1398, %v1397, %v1348
    %vm1400 = vcmask 310272
    %v1401 = vsel %vm1400, %v1348, %v1352
    %vm1402 = vcmask 711680
    %v1403 = vsel %vm1402, %v1401, %v1356
    %v1404 = vsel %vm511, %v1356, %v1360
    %vm1405 = vcmask 465920
    %v1406 = vsel %vm1405, %v1404, %v1364
    %vm1407 = vcmask 867328
    %v1408 = vsel %vm1407, %v1406, %v1368
    %vm1409 = vcmask 220160
    %v1410 = vsel %vm1409, %v1368, %v1372
    %vm1411 = vcmask 621568
    %v1412 = vsel %vm1411, %v1410, %v1376
    %vm1413 = vcmask 1022976
    %v1414 = vsel %vm1413, %v1412, %v1380
    %vm1415 = vcmask 375808
    %v1416 = vsel %vm1415, %v1380, %v1384
    %vm1417 = vcmask 777216
    %v1418 = vsel %vm1417, %v1416, %v1388
    %v1420 = vrot.slane %v1327, 1
    %1421 = vrot.lane.b32.xlu0 %v1420, 49
    %v1422 = vpop.permute.xlu0 %1421
    %v1424 = vrot.slane %v1327, 2
    %1425 = vrot.lane.b32.xlu0 %v1424, 98
    %v1426 = vpop.permute.xlu0 %1425
    %v1428 = vrot.slane %v1327, 3
    %1429 = vrot.lane.b32.xlu0 %v1428, 19
    %v1430 = vpop.permute.xlu0 %1429
    %v1432 = vrot.slane %v1327, 4
    %1433 = vrot.lane.b32.xlu0 %v1432, 68
    %v1434 = vpop.permute.xlu0 %1433
    %v1436 = vrot.slane %v1327, 5
    %1437 = vrot.lane.b32.xlu0 %v1436, 117
    %v1438 = vpop.permute.xlu0 %1437
    %v1440 = vrot.slane %v1327, 6
    %1441 = vrot.lane.b32.xlu0 %v1440, 38
    %v1442 = vpop.permute.xlu0 %1441
    %v1444 = vrot.slane %v1327, 7
    %1445 = vrot.lane.b32.xlu0 %v1444, 87
    %v1446 = vpop.permute.xlu0 %1445
    %1449 = vrot.lane.b32.xlu0 %v1328, 8
    %v1450 = vpop.permute.xlu0 %1449
    %v1452 = vrot.slane %v1328, 1
    %1453 = vrot.lane.b32.xlu0 %v1452, 57
    %v1454 = vpop.permute.xlu0 %1453
    %v1456 = vrot.slane %v1328, 2
    %1457 = vrot.lane.b32.xlu0 %v1456, 106
    %v1458 = vpop.permute.xlu0 %1457
    %v1460 = vrot.slane %v1328, 3
    %1461 = vrot.lane.b32.xlu0 %v1460, 27
    %v1462 = vpop.permute.xlu0 %1461
    %v1464 = vrot.slane %v1328, 4
    %1465 = vrot.lane.b32.xlu0 %v1464, 76
    %v1466 = vpop.permute.xlu0 %1465
    %v1468 = vrot.slane %v1328, 5
    %1469 = vrot.lane.b32.xlu0 %v1468, 125
    %v1470 = vpop.permute.xlu0 %1469
    %v1472 = vrot.slane %v1328, 6
    %1473 = vrot.lane.b32.xlu0 %v1472, 46
    %v1474 = vpop.permute.xlu0 %1473
    %v1476 = vrot.slane %v1328, 7
    %1477 = vrot.lane.b32.xlu0 %v1476, 95
    %v1478 = vpop.permute.xlu0 %1477
    %v1480 = vsel %vm1390, %v1327, %v1422
    %v1481 = vsel %vm1392, %v1480, %v1426
    %v1482 = vsel %vm1394, %v1426, %v1430
    %v1483 = vsel %vm1396, %v1482, %v1434
    %v1484 = vsel %vm1398, %v1483, %v1438
    %v1485 = vsel %vm1400, %v1438, %v1442
    %v1486 = vsel %vm1402, %v1485, %v1446
    %v1487 = vsel %vm511, %v1446, %v1450
    %v1488 = vsel %vm1405, %v1487, %v1454
    %v1489 = vsel %vm1407, %v1488, %v1458
    %v1490 = vsel %vm1409, %v1458, %v1462
    %v1491 = vsel %vm1411, %v1490, %v1466
    %v1492 = vsel %vm1413, %v1491, %v1470
    %v1493 = vsel %vm1415, %v1470, %v1474
    %v1494 = vsel %vm1417, %v1493, %v1478
    %1501 = vrot.lane.b32.xlu0 %v1481, 16
    %v1502 = vpop.permute.xlu0 %1501
    %1503 = vrot.lane.b32.xlu0 %v1484, 16
    %v1504 = vpop.permute.xlu0 %1503
    %1505 = vrot.lane.b32.xlu0 %v1486, 16
    %v1506 = vpop.permute.xlu0 %1505
    %1507 = vrot.lane.b32.xlu0 %v1489, 16
    %v1508 = vpop.permute.xlu0 %1507
    %1509 = vrot.lane.b32.xlu0 %v1492, 16
    %v1510 = vpop.permute.xlu0 %1509
    %1511 = vrot.lane.b32.xlu0 %v1494, 16
    %v1512 = vpop.permute.xlu0 %1511
    %1513 = vrot.lane.b32.xlu0 %v1478, 16
    %v1514 = vpop.permute.xlu0 %1513
    %vm1515 = vcmask 130048
    %v1516 = vsel %vm1515, %v1502, %v1504
    %v1517 = vsel %vm1515, %v1504, %v1506
    %v1518 = vsel %vm1515, %v1506, %v1508
    %v1519 = vsel %vm1515, %v1508, %v1510
    %v1520 = vsel %vm1515, %v1510, %v1512
    %v1521 = vsel %vm1515, %v1512, %v1514
    %v1529 = vsel %vm1515, %v1388, %v1502
    %1530 = vrot.lane.b32.xlu0 %v1220, 64
    %v1531 = vpop.permute.xlu0 %1530
    %1532 = vrot.lane.b32.xlu0 %v1221, 64
    %v1533 = vpop.permute.xlu0 %1532
    %1534 = vrot.lane.b32.xlu0 %v1222, 64
    %v1535 = vpop.permute.xlu0 %1534
    %1536 = vrot.lane.b32.xlu0 %v1223, 64
    %v1537 = vpop.permute.xlu0 %1536
    %1542 = vrot.lane.b32.xlu0 %v1220, 63
    %v1543 = vpop.permute.xlu0 %1542
    %1544 = vrot.lane.b32.xlu0 %v1221, 63
    %v1545 = vpop.permute.xlu0 %1544
    %1546 = vrot.lane.b32.xlu0 %v1222, 63
    %v1547 = vpop.permute.xlu0 %1546
    %1548 = vrot.lane.b32.xlu0 %v1223, 63
    %v1549 = vpop.permute.xlu0 %1548
    %1554 = vrot.lane.b32.xlu0 %v1220, 62
    %v1555 = vpop.permute.xlu0 %1554
    %1556 = vrot.lane.b32.xlu0 %v1221, 62
    %v1557 = vpop.permute.xlu0 %1556
    %1558 = vrot.lane.b32.xlu0 %v1222, 62
    %v1559 = vpop.permute.xlu0 %1558
    %1560 = vrot.lane.b32.xlu0 %v1223, 62
    %v1561 = vpop.permute.xlu0 %1560
    %1566 = vrot.lane.b32.xlu0 %v1220, 61
    %v1567 = vpop.permute.xlu0 %1566
    %1568 = vrot.lane.b32.xlu0 %v1221, 61
    %v1569 = vpop.permute.xlu0 %1568
    %1570 = vrot.lane.b32.xlu0 %v1222, 61
    %v1571 = vpop.permute.xlu0 %1570
    %1572 = vrot.lane.b32.xlu0 %v1223, 61
    %v1573 = vpop.permute.xlu0 %1572
    %1578 = vrot.lane.b32.xlu0 %v1220, 60
    %v1579 = vpop.permute.xlu0 %1578
    %1580 = vrot.lane.b32.xlu0 %v1221, 60
    %v1581 = vpop.permute.xlu0 %1580
    %1582 = vrot.lane.b32.xlu0 %v1222, 60
    %v1583 = vpop.permute.xlu0 %1582
    %1584 = vrot.lane.b32.xlu0 %v1223, 60
    %v1585 = vpop.permute.xlu0 %1584
    %1590 = vrot.lane.b32.xlu0 %v1220, 59
    %v1591 = vpop.permute.xlu0 %1590
    %1592 = vrot.lane.b32.xlu0 %v1221, 59
    %v1593 = vpop.permute.xlu0 %1592
    %1594 = vrot.lane.b32.xlu0 %v1222, 59
    %v1595 = vpop.permute.xlu0 %1594
    %1596 = vrot.lane.b32.xlu0 %v1223, 59
    %v1597 = vpop.permute.xlu0 %1596
    %1602 = vrot.lane.b32.xlu0 %v1220, 58
    %v1603 = vpop.permute.xlu0 %1602
    %1604 = vrot.lane.b32.xlu0 %v1221, 58
    %v1605 = vpop.permute.xlu0 %1604
    %1606 = vrot.lane.b32.xlu0 %v1222, 58
    %v1607 = vpop.permute.xlu0 %1606
    %1608 = vrot.lane.b32.xlu0 %v1223, 58
    %v1609 = vpop.permute.xlu0 %1608
    %v1614 = vsel %vm528, %v1531, %v1543
    %v1615 = vsel %vm528, %v1533, %v1545
    %v1616 = vsel %vm528, %v1535, %v1547
    %v1617 = vsel %vm528, %v1537, %v1549
    %v1618 = vsel %vm1304, %v1614, %v1555
    %v1619 = vsel %vm1304, %v1615, %v1557
    %v1620 = vsel %vm1304, %v1616, %v1559
    %v1621 = vsel %vm1304, %v1617, %v1561
    %v1622 = vsel %vm1309, %v1618, %v1567
    %v1623 = vsel %vm1309, %v1619, %v1569
    %v1624 = vsel %vm1309, %v1620, %v1571
    %v1625 = vsel %vm1309, %v1621, %v1573
    %v1626 = vsel %vm1314, %v1622, %v1579
    %v1627 = vsel %vm1314, %v1623, %v1581
    %v1628 = vsel %vm1314, %v1624, %v1583
    %v1629 = vsel %vm1314, %v1625, %v1585
    %v1630 = vsel %vm1319, %v1626, %v1591
    %v1631 = vsel %vm1319, %v1627, %v1593
    %v1632 = vsel %vm1319, %v1628, %v1595
    %v1633 = vsel %vm1319, %v1629, %v1597
    %v1634 = vsel %vm1324, %v1630, %v1603
    %v1635 = vsel %vm1324, %v1631, %v1605
    %v1636 = vsel %vm1324, %v1632, %v1607
    %v1637 = vsel %vm1324, %v1633, %v1609
    %v1639 = vrot.slane %v1634, 1
    %1640 = vrot.lane.b32.xlu0 %v1639, 49
    %v1641 = vpop.permute.xlu0 %1640
    %v1643 = vrot.slane %v1634, 2
    %1644 = vrot.lane.b32.xlu0 %v1643, 98
    %v1645 = vpop.permute.xlu0 %1644
    %v1647 = vrot.slane %v1634, 3
    %1648 = vrot.lane.b32.xlu0 %v1647, 19
    %v1649 = vpop.permute.xlu0 %1648
    %v1651 = vrot.slane %v1634, 4
    %1652 = vrot.lane.b32.xlu0 %v1651, 68
    %v1653 = vpop.permute.xlu0 %1652
    %v1655 = vrot.slane %v1634, 5
    %1656 = vrot.lane.b32.xlu0 %v1655, 117
    %v1657 = vpop.permute.xlu0 %1656
    %v1659 = vrot.slane %v1634, 6
    %1660 = vrot.lane.b32.xlu0 %v1659, 38
    %v1661 = vpop.permute.xlu0 %1660
    %v1663 = vrot.slane %v1634, 7
    %1664 = vrot.lane.b32.xlu0 %v1663, 87
    %v1665 = vpop.permute.xlu0 %1664
    %1668 = vrot.lane.b32.xlu0 %v1635, 8
    %v1669 = vpop.permute.xlu0 %1668
    %v1671 = vrot.slane %v1635, 1
    %1672 = vrot.lane.b32.xlu0 %v1671, 57
    %v1673 = vpop.permute.xlu0 %1672
    %v1675 = vrot.slane %v1635, 2
    %1676 = vrot.lane.b32.xlu0 %v1675, 106
    %v1677 = vpop.permute.xlu0 %1676
    %v1679 = vrot.slane %v1635, 3
    %1680 = vrot.lane.b32.xlu0 %v1679, 27
    %v1681 = vpop.permute.xlu0 %1680
    %v1683 = vrot.slane %v1635, 4
    %1684 = vrot.lane.b32.xlu0 %v1683, 76
    %v1685 = vpop.permute.xlu0 %1684
    %v1687 = vrot.slane %v1635, 5
    %1688 = vrot.lane.b32.xlu0 %v1687, 125
    %v1689 = vpop.permute.xlu0 %1688
    %v1691 = vrot.slane %v1635, 6
    %1692 = vrot.lane.b32.xlu0 %v1691, 46
    %v1693 = vpop.permute.xlu0 %1692
    %v1695 = vrot.slane %v1635, 7
    %1696 = vrot.lane.b32.xlu0 %v1695, 95
    %v1697 = vpop.permute.xlu0 %1696
    %v1699 = vsel %vm1390, %v1634, %v1641
    %v1700 = vsel %vm1392, %v1699, %v1645
    %v1701 = vsel %vm1394, %v1645, %v1649
    %v1702 = vsel %vm1396, %v1701, %v1653
    %v1703 = vsel %vm1398, %v1702, %v1657
    %v1704 = vsel %vm1400, %v1657, %v1661
    %v1705 = vsel %vm1402, %v1704, %v1665
    %v1706 = vsel %vm511, %v1665, %v1669
    %v1707 = vsel %vm1405, %v1706, %v1673
    %v1708 = vsel %vm1407, %v1707, %v1677
    %v1709 = vsel %vm1409, %v1677, %v1681
    %v1710 = vsel %vm1411, %v1709, %v1685
    %v1711 = vsel %vm1413, %v1710, %v1689
    %v1712 = vsel %vm1415, %v1689, %v1693
    %v1713 = vsel %vm1417, %v1712, %v1697
    %v1715 = vrot.slane %v1636, 1
    %1716 = vrot.lane.b32.xlu0 %v1715, 49
    %v1717 = vpop.permute.xlu0 %1716
    %v1719 = vrot.slane %v1636, 2
    %1720 = vrot.lane.b32.xlu0 %v1719, 98
    %v1721 = vpop.permute.xlu0 %1720
    %v1723 = vrot.slane %v1636, 3
    %1724 = vrot.lane.b32.xlu0 %v1723, 19
    %v1725 = vpop.permute.xlu0 %1724
    %v1727 = vrot.slane %v1636, 4
    %1728 = vrot.lane.b32.xlu0 %v1727, 68
    %v1729 = vpop.permute.xlu0 %1728
    %v1731 = vrot.slane %v1636, 5
    %1732 = vrot.lane.b32.xlu0 %v1731, 117
    %v1733 = vpop.permute.xlu0 %1732
    %v1735 = vrot.slane %v1636, 6
    %1736 = vrot.lane.b32.xlu0 %v1735, 38
    %v1737 = vpop.permute.xlu0 %1736
    %v1739 = vrot.slane %v1636, 7
    %1740 = vrot.lane.b32.xlu0 %v1739, 87
    %v1741 = vpop.permute.xlu0 %1740
    %1744 = vrot.lane.b32.xlu0 %v1637, 8
    %v1745 = vpop.permute.xlu0 %1744
    %v1747 = vrot.slane %v1637, 1
    %1748 = vrot.lane.b32.xlu0 %v1747, 57
    %v1749 = vpop.permute.xlu0 %1748
    %v1751 = vrot.slane %v1637, 2
    %1752 = vrot.lane.b32.xlu0 %v1751, 106
    %v1753 = vpop.permute.xlu0 %1752
    %v1755 = vrot.slane %v1637, 3
    %1756 = vrot.lane.b32.xlu0 %v1755, 27
    %v1757 = vpop.permute.xlu0 %1756
    %v1759 = vrot.slane %v1637, 4
    %1760 = vrot.lane.b32.xlu0 %v1759, 76
    %v1761 = vpop.permute.xlu0 %1760
    %v1763 = vrot.slane %v1637, 5
    %1764 = vrot.lane.b32.xlu0 %v1763, 125
    %v1765 = vpop.permute.xlu0 %1764
    %v1767 = vrot.slane %v1637, 6
    %1768 = vrot.lane.b32.xlu0 %v1767, 46
    %v1769 = vpop.permute.xlu0 %1768
    %v1771 = vrot.slane %v1637, 7
    %1772 = vrot.lane.b32.xlu0 %v1771, 95
    %v1773 = vpop.permute.xlu0 %1772
    %v1775 = vsel %vm1390, %v1636, %v1717
    %v1776 = vsel %vm1392, %v1775, %v1721
    %v1777 = vsel %vm1394, %v1721, %v1725
    %v1778 = vsel %vm1396, %v1777, %v1729
    %v1779 = vsel %vm1398, %v1778, %v1733
    %v1780 = vsel %vm1400, %v1733, %v1737
    %v1781 = vsel %vm1402, %v1780, %v1741
    %v1782 = vsel %vm511, %v1741, %v1745
    %v1783 = vsel %vm1405, %v1782, %v1749
    %v1784 = vsel %vm1407, %v1783, %v1753
    %v1785 = vsel %vm1409, %v1753, %v1757
    %v1786 = vsel %vm1411, %v1785, %v1761
    %v1787 = vsel %vm1413, %v1786, %v1765
    %v1788 = vsel %vm1415, %v1765, %v1769
    %v1789 = vsel %vm1417, %v1788, %v1773
    %1796 = vrot.lane.b32.xlu0 %v1776, 16
    %v1797 = vpop.permute.xlu0 %1796
    %1798 = vrot.lane.b32.xlu0 %v1779, 16
    %v1799 = vpop.permute.xlu0 %1798
    %1800 = vrot.lane.b32.xlu0 %v1781, 16
    %v1801 = vpop.permute.xlu0 %1800
    %1802 = vrot.lane.b32.xlu0 %v1784, 16
    %v1803 = vpop.permute.xlu0 %1802
    %1804 = vrot.lane.b32.xlu0 %v1787, 16
    %v1805 = vpop.permute.xlu0 %1804
    %1806 = vrot.lane.b32.xlu0 %v1789, 16
    %v1807 = vpop.permute.xlu0 %1806
    %1808 = vrot.lane.b32.xlu0 %v1773, 16
    %v1809 = vpop.permute.xlu0 %1808
    %v1810 = vsel %vm1515, %v1797, %v1799
    %v1811 = vsel %vm1515, %v1799, %v1801
    %v1812 = vsel %vm1515, %v1801, %v1803
    %v1813 = vsel %vm1515, %v1803, %v1805
    %v1814 = vsel %vm1515, %v1805, %v1807
    %v1815 = vsel %vm1515, %v1807, %v1809
    %v1817 = vsel %vm1515, %v1697, %v1797
    %v1825 = vrot.slane %v1700, 7
    %v1826 = vrot.slane %v1703, 7
    %v1827 = vrot.slane %v1705, 7
    %v1828 = vrot.slane %v1708, 7
    %v1829 = vrot.slane %v1711, 7
    %v1830 = vrot.slane %v1713, 7
    %v1831 = vrot.slane %v1817, 7
    %v1832 = vrot.slane %v1810, 7
    %v1833 = vrot.slane %v1811, 7
    %v1834 = vrot.slane %v1812, 7
    %v1835 = vrot.slane %v1813, 7
    %v1836 = vrot.slane %v1814, 7
    %v1837 = vrot.slane %v1815, 7
    %vm1851 = vcmask 1040384
    %v1852 = vsel %vm1851, %v1393, %v1825
    %v1853 = vsel %vm1851, %v1399, %v1826
    %v1854 = vsel %vm1851, %v1403, %v1827
    %v1855 = vsel %vm1851, %v1408, %v1828
    %v1856 = vsel %vm1851, %v1414, %v1829
    %v1857 = vsel %vm1851, %v1418, %v1830
    %v1858 = vsel %vm1851, %v1529, %v1831
    %v1859 = vsel %vm1851, %v1516, %v1832
    %v1860 = vsel %vm1851, %v1517, %v1833
    %v1861 = vsel %vm1851, %v1518, %v1834
    %v1862 = vsel %vm1851, %v1519, %v1835
    %v1863 = vsel %vm1851, %v1520, %v1836
    %v1864 = vsel %vm1851, %v1521, %v1837
    %v1878 = vcombine.low %v1852, %v1853
    %v1879 = vcombine.low %v1854, %v1855
    %v1881 = vunpack.c.l.s4 1983009808
    %v1882 = vunpack.c.0.s8 %v1881
    %v1883 = vlaneseq
    %v1884 = vshrl.u32 %v1883, 7
    %v1885 = vsub.s32 %v1882, %v1884
    %v1886 = vrot.slane %v1878, %v1885
    %v1888 = vunpack.c.l.s4 1983009808
    %v1889 = vunpack.c.0.s8 %v1888
    %v1890 = vlaneseq
    %v1891 = vshrl.u32 %v1890, 7
    %v1892 = vsub.s32 %v1889, %v1891
    %v1893 = vrot.slane %v1879, %v1892
    %v1894 = vcombine.low %v1886, %v1893
    %v1895 = vcombine.low %v1856, %v1857
    %v1896 = vcombine.low %v1858, %v1859
    %v1898 = vunpack.c.l.s4 1983009808
    %v1899 = vunpack.c.0.s8 %v1898
    %v1900 = vlaneseq
    %v1901 = vshrl.u32 %v1900, 7
    %v1902 = vsub.s32 %v1899, %v1901
    %v1903 = vrot.slane %v1895, %v1902
    %v1905 = vunpack.c.l.s4 1983009808
    %v1906 = vunpack.c.0.s8 %v1905
    %v1907 = vlaneseq
    %v1908 = vshrl.u32 %v1907, 7
    %v1909 = vsub.s32 %v1906, %v1908
    %v1910 = vrot.slane %v1896, %v1909
    %v1911 = vcombine.low %v1903, %v1910
    %v1912 = vcombine.low %v1860, %v1861
    %v1913 = vcombine.low %v1862, %v1863
    %v1915 = vunpack.c.l.s4 1983009808
    %v1916 = vunpack.c.0.s8 %v1915
    %v1917 = vlaneseq
    %v1918 = vshrl.u32 %v1917, 7
    %v1919 = vsub.s32 %v1916, %v1918
    %v1920 = vrot.slane %v1912, %v1919
    %v1922 = vunpack.c.l.s4 1983009808
    %v1923 = vunpack.c.0.s8 %v1922
    %v1924 = vlaneseq
    %v1925 = vshrl.u32 %v1924, 7
    %v1926 = vsub.s32 %v1923, %v1925
    %v1927 = vrot.slane %v1913, %v1926
    %v1928 = vcombine.low %v1920, %v1927
    %v1930 = vunpack.c.l.s4 1983009808
    %v1931 = vunpack.c.0.s8 %v1930
    %v1932 = vlaneseq
    %v1933 = vshrl.u32 %v1932, 7
    %v1934 = vsub.s32 %v1931, %v1933
    %v1935 = vrot.slane %v1864, %v1934
    %1940 = vst [vmem:[#allocation4] sm:$0xff] %v1894
    %1941 = vst [vmem:[#allocation4 + $0x8] sm:$0xff] %v1911
    %1942 = vst [vmem:[#allocation4 + $0x10] sm:$0xff] %v1928
    %vm1943 = vcmask 254976
    %1944 = vst.msk [vmem:[#allocation4 + $0x18] sm:$0x3] %vm1943, %v1935
    %v1945 = vld [vmem:[%s6] sm:$0xff]
    %v1946 = vld [vmem:[%s6 + $0x8] sm:$0xff]
    %v1947 = vld [vmem:[%s6 + $0x10] sm:$0xff]
    %v1948 = vld [vmem:[%s6 + $0x18] sm:$0xff]
    %v1949 = vld [vmem:[%s6 + $0x20] sm:$0xff]
    %v1950 = vld [vmem:[%s6 + $0x28] sm:$0xff]
    %v1951 = vld [vmem:[%s6 + $0x30] sm:$0xff]
    %v1952 = vld [vmem:[%s6 + $0x38] sm:$0xff]
    %v1953 = vld [vmem:[%s6 + $0x40] sm:$0xff]
    %v1954 = vld [vmem:[%s6 + $0x48] sm:$0xff]
    %v1955 = vld [vmem:[%s6 + $0x50] sm:$0xff]
    %v1956 = vld [vmem:[%s6 + $0x58] sm:$0xff]
    %v1957 = vld [vmem:[%s6 + $0x60] sm:$0xff]
    %v1958 = vld [vmem:[%s6 + $0x68] sm:$0xff]
    %v1959 = vld [vmem:[%s6 + $0x70] sm:$0xff]
    %v1960 = vld [vmem:[%s6 + $0x78] sm:$0xff]
    %v1961 = vld [vmem:[%s6 + $0x80] sm:$0xff]
    %v1962 = vld [vmem:[%s6 + $0x88] sm:$0xff]
    %v1963 = vld [vmem:[%s6 + $0x90] sm:$0xff]
    %v1964 = vld [vmem:[%s6 + $0x98] sm:$0xff]
    %v1965 = vld [vmem:[%s6 + $0xa0] sm:$0xff]
    %v1966 = vld [vmem:[%s6 + $0xa8] sm:$0xff]
    %v1967 = vld [vmem:[%s6 + $0xb0] sm:$0xff]
    %v1968 = vld [vmem:[%s6 + $0xb8] sm:$0xff]
    %v1969 = vld [vmem:[%s6 + $0xc0] sm:$0xff]
    %v1970 = vld [vmem:[%s6 + $0xc8] sm:$0xff]
    %v1971 = vld [vmem:[%s6 + $0xd0] sm:$0xff]
    %v1972 = vld [vmem:[%s6 + $0xd8] sm:$0xff]
    %v1973 = vld [vmem:[%s6 + $0xe0] sm:$0xff]
    %v1974 = vld [vmem:[%s6 + $0xe8] sm:$0xff]
    %v1975 = vld [vmem:[%s6 + $0xf0] sm:$0xff]
    %v1976 = vld [vmem:[%s6 + $0xf8] sm:$0xff]
    %v1977 = vld [vmem:[%s6 + $0x100] sm:$0xff]
    %v1978 = vld [vmem:[%s6 + $0x108] sm:$0xff]
    %v1979 = vld [vmem:[%s6 + $0x110] sm:$0xff]
    %v1980 = vld [vmem:[%s6 + $0x118] sm:$0xff]
    %v1981 = vld [vmem:[%s6 + $0x120] sm:$0xff]
    %v1982 = vld [vmem:[%s6 + $0x128] sm:$0xff]
    %v1983 = vld [vmem:[%s6 + $0x130] sm:$0xff]
    %v1984 = vld [vmem:[%s6 + $0x138] sm:$0xff]
    %v1985 = vld [vmem:[%s6 + $0x140] sm:$0xff]
    %v1986 = vld [vmem:[%s6 + $0x148] sm:$0xff]
    %v1987 = vld [vmem:[%s6 + $0x150] sm:$0xff]
    %v1988 = vld [vmem:[%s6 + $0x158] sm:$0xff]
    %v1989 = vld [vmem:[%s6 + $0x160] sm:$0xff]
    %v1990 = vld [vmem:[%s6 + $0x168] sm:$0xff]
    %v1991 = vld [vmem:[%s6 + $0x170] sm:$0xff]
    %v1992 = vld [vmem:[%s6 + $0x178] sm:$0xff]
    %v1993 = vld [vmem:[%s6 + $0x180] sm:$0xff]
    %v1994 = vld [vmem:[%s6 + $0x188] sm:$0xff]
    %v1995 = vld [vmem:[%s6 + $0x190] sm:$0xff]
    %v1996 = vld [vmem:[%s6 + $0x198] sm:$0xff]
    %v1997 = vld [vmem:[%s6 + $0x1a0] sm:$0xff]
    %v1998 = vld [vmem:[%s6 + $0x1a8] sm:$0xff]
    %v1999 = vld [vmem:[%s6 + $0x1b0] sm:$0xff]
    %v2000 = vld [vmem:[%s6 + $0x1b8] sm:$0xff]
    %v2001 = vld [vmem:[%s6 + $0x1c0] sm:$0xff]
    %v2002 = vld [vmem:[%s6 + $0x1c8] sm:$0xff]
    %v2003 = vld [vmem:[%s6 + $0x1d0] sm:$0xff]
    %v2004 = vld [vmem:[%s6 + $0x1d8] sm:$0xff]
    %v2005 = vld [vmem:[%s6 + $0x1e0] sm:$0xff]
    %v2006 = vld [vmem:[%s6 + $0x1e8] sm:$0xff]
    %v2007 = vld [vmem:[%s6 + $0x1f0] sm:$0xff]
    %v2008 = vld [vmem:[%s6 + $0x1f8] sm:$0xff]
    %v2009 = vld [vmem:[%s6 + $0x200] sm:$0xff]
    %v2010 = vld [vmem:[%s6 + $0x208] sm:$0xff]
    %v2011 = vld [vmem:[%s6 + $0x210] sm:$0xff]
    %v2012 = vld [vmem:[%s6 + $0x218] sm:$0xff]
    %v2013 = vld [vmem:[%s6 + $0x220] sm:$0xff]
    %v2014 = vld [vmem:[%s6 + $0x228] sm:$0xff]
    %v2015 = vld [vmem:[%s6 + $0x230] sm:$0xff]
    %v2016 = vld [vmem:[%s6 + $0x238] sm:$0xff]
    %v2017 = vld [vmem:[%s6 + $0x240] sm:$0xff]
    %v2018 = vld [vmem:[%s6 + $0x248] sm:$0xff]
    %v2019 = vld [vmem:[%s6 + $0x250] sm:$0xff]
    %v2020 = vld [vmem:[%s6 + $0x258] sm:$0xff]
    %v2021 = vld [vmem:[%s6 + $0x260] sm:$0xff]
    %v2022 = vld [vmem:[%s6 + $0x268] sm:$0xff]
    %v2023 = vld [vmem:[%s6 + $0x270] sm:$0xff]
    %v2024 = vld [vmem:[%s6 + $0x278] sm:$0xff]
    %v2025 = vld [vmem:[%s6 + $0x280] sm:$0xff]
    %v2026 = vld [vmem:[%s6 + $0x288] sm:$0xff]
    %v2027 = vld [vmem:[%s6 + $0x290] sm:$0xff]
    %v2028 = vld [vmem:[%s6 + $0x298] sm:$0xff]
    %v2029 = vld [vmem:[%s6 + $0x2a0] sm:$0xff]
    %v2030 = vld [vmem:[%s6 + $0x2a8] sm:$0xff]
    %v2031 = vld [vmem:[%s6 + $0x2b0] sm:$0xff]
    %v2032 = vld [vmem:[%s6 + $0x2b8] sm:$0xff]
    %v2033 = vld [vmem:[%s6 + $0x2c0] sm:$0xff]
    %v2034 = vld [vmem:[%s6 + $0x2c8] sm:$0xff]
    %v2035 = vld [vmem:[%s6 + $0x2d0] sm:$0xff]
    %v2036 = vld [vmem:[%s6 + $0x2d8] sm:$0xff]
    %v2037 = vld [vmem:[%s6 + $0x2e0] sm:$0xff]
    %v2038 = vld [vmem:[%s6 + $0x2e8] sm:$0xff]
    %v2039 = vld [vmem:[%s6 + $0x2f0] sm:$0xff]
    %v2040 = vld [vmem:[%s6 + $0x2f8] sm:$0xff]
    %v2041 = vld [vmem:[%s6 + $0x300] sm:$0xff]
    %v2042 = vld [vmem:[%s6 + $0x308] sm:$0xff]
    %v2043 = vld [vmem:[%s6 + $0x310] sm:$0xff]
    %v2044 = vld [vmem:[%s6 + $0x318] sm:$0xff]
    %v2045 = vld [vmem:[%s6 + $0x320] sm:$0xff]
    %v2046 = vld [vmem:[%s6 + $0x328] sm:$0xff]
    %v2047 = vld [vmem:[%s6 + $0x330] sm:$0xff]
    %v2048 = vld [vmem:[%s6 + $0x338] sm:$0xff]
    %v2049 = vld [vmem:[%s6 + $0x340] sm:$0xff]
    %v2050 = vld [vmem:[%s6 + $0x348] sm:$0xff]
    %v2051 = vld [vmem:[%s6 + $0x350] sm:$0xff]
    %v2052 = vld [vmem:[%s6 + $0x358] sm:$0xff]
    %v2053 = vld [vmem:[%s6 + $0x360] sm:$0xff]
    %v2054 = vld [vmem:[%s6 + $0x368] sm:$0xff]
    %v2055 = vld [vmem:[%s6 + $0x370] sm:$0xff]
    %v2056 = vld [vmem:[%s6 + $0x378] sm:$0xff]
    %v2057 = vld [vmem:[%s6 + $0x380] sm:$0xff]
    %v2058 = vld [vmem:[%s6 + $0x388] sm:$0xff]
    %v2059 = vld [vmem:[%s6 + $0x390] sm:$0xff]
    %v2060 = vld [vmem:[%s6 + $0x398] sm:$0xff]
    %v2061 = vld [vmem:[%s6 + $0x3a0] sm:$0xff]
    %v2062 = vld [vmem:[%s6 + $0x3a8] sm:$0xff]
    %v2063 = vld [vmem:[%s6 + $0x3b0] sm:$0xff]
    %v2064 = vld [vmem:[%s6 + $0x3b8] sm:$0xff]
    %v2065 = vld [vmem:[%s6 + $0x3c0] sm:$0xff]
    %v2066 = vld [vmem:[%s6 + $0x3c8] sm:$0xff]
    %v2067 = vld [vmem:[%s6 + $0x3d0] sm:$0xff]
    %v2068 = vld [vmem:[%s6 + $0x3d8] sm:$0xff]
    %v2069 = vld [vmem:[%s6 + $0x3e0] sm:$0xff]
    %v2070 = vld [vmem:[%s6 + $0x3e8] sm:$0xff]
    %v2071 = vld [vmem:[%s6 + $0x3f0] sm:$0xff]
    %v2072 = vld [vmem:[%s6 + $0x3f8] sm:$0xff]
    %v2073 = vld [vmem:[%s6 + $0x400] sm:$0xff]
    %v2074 = vld [vmem:[%s6 + $0x408] sm:$0xff]
    %v2075 = vld [vmem:[%s6 + $0x410] sm:$0xff]
    %v2076 = vld [vmem:[%s6 + $0x418] sm:$0xff]
    %v2077 = vld [vmem:[%s6 + $0x420] sm:$0xff]
    %v2078 = vld [vmem:[%s6 + $0x428] sm:$0xff]
    %v2079 = vld [vmem:[%s6 + $0x430] sm:$0xff]
    %v2080 = vld [vmem:[%s6 + $0x438] sm:$0xff]
    %v2081 = vld [vmem:[%s6 + $0x440] sm:$0xff]
    %v2082 = vld [vmem:[%s6 + $0x448] sm:$0xff]
    %v2083 = vld [vmem:[%s6 + $0x450] sm:$0xff]
    %v2084 = vld [vmem:[%s6 + $0x458] sm:$0xff]
    %v2085 = vld [vmem:[%s6 + $0x460] sm:$0xff]
    %v2086 = vld [vmem:[%s6 + $0x468] sm:$0xff]
    %v2087 = vld [vmem:[%s6 + $0x470] sm:$0xff]
    %v2088 = vld [vmem:[%s6 + $0x478] sm:$0xff]
    %v2089 = vld [vmem:[%s6 + $0x480] sm:$0xff]
    %v2090 = vld [vmem:[%s6 + $0x488] sm:$0xff]
    %v2091 = vld [vmem:[%s6 + $0x490] sm:$0xff]
    %v2092 = vld [vmem:[%s6 + $0x498] sm:$0xff]
    %v2093 = vld [vmem:[%s6 + $0x4a0] sm:$0xff]
    %v2094 = vld [vmem:[%s6 + $0x4a8] sm:$0xff]
    %v2095 = vld [vmem:[%s6 + $0x4b0] sm:$0xff]
    %v2096 = vld [vmem:[%s6 + $0x4b8] sm:$0xff]
    %v2097 = vld [vmem:[%s6 + $0x4c0] sm:$0xff]
    %v2098 = vld [vmem:[%s6 + $0x4c8] sm:$0xff]
    %v2099 = vld [vmem:[%s6 + $0x4d0] sm:$0xff]
    %v2100 = vld [vmem:[%s6 + $0x4d8] sm:$0xff]
    %v2101 = vld [vmem:[%s6 + $0x4e0] sm:$0xff]
    %v2102 = vld [vmem:[%s6 + $0x4e8] sm:$0xff]
    %v2103 = vld [vmem:[%s6 + $0x4f0] sm:$0xff]
    %v2104 = vld [vmem:[%s6 + $0x4f8] sm:$0xff]
    %v2105 = vld [vmem:[%s6 + $0x500] sm:$0xff]
    %v2106 = vld [vmem:[%s6 + $0x508] sm:$0xff]
    %v2107 = vld [vmem:[%s6 + $0x510] sm:$0xff]
    %v2108 = vld [vmem:[%s6 + $0x518] sm:$0xff]
    %v2109 = vld [vmem:[%s6 + $0x520] sm:$0xff]
    %v2110 = vld [vmem:[%s6 + $0x528] sm:$0xff]
    %v2111 = vld [vmem:[%s6 + $0x530] sm:$0xff]
    %v2112 = vld [vmem:[%s6 + $0x538] sm:$0xff]
    %v2113 = vld [vmem:[%s6 + $0x540] sm:$0xff]
    %v2114 = vld [vmem:[%s6 + $0x548] sm:$0xff]
    %v2115 = vld [vmem:[%s6 + $0x550] sm:$0xff]
    %v2116 = vld [vmem:[%s6 + $0x558] sm:$0xff]
    %v2117 = vld [vmem:[%s6 + $0x560] sm:$0xff]
    %v2118 = vld [vmem:[%s6 + $0x568] sm:$0xff]
    %v2119 = vld [vmem:[%s6 + $0x570] sm:$0xff]
    %v2120 = vld [vmem:[%s6 + $0x578] sm:$0xff]
    %v2121 = vld [vmem:[%s6 + $0x580] sm:$0xff]
    %v2122 = vld [vmem:[%s6 + $0x588] sm:$0xff]
    %v2123 = vld [vmem:[%s6 + $0x590] sm:$0xff]
    %v2124 = vld [vmem:[%s6 + $0x598] sm:$0xff]
    %v2125 = vld [vmem:[%s6 + $0x5a0] sm:$0xff]
    %v2126 = vld [vmem:[%s6 + $0x5a8] sm:$0xff]
    %v2127 = vld [vmem:[%s6 + $0x5b0] sm:$0xff]
    %v2128 = vld [vmem:[%s6 + $0x5b8] sm:$0xff]
    %v2129 = vld [vmem:[%s6 + $0x5c0] sm:$0xff]
    %v2130 = vld [vmem:[%s6 + $0x5c8] sm:$0xff]
    %v2131 = vld [vmem:[%s6 + $0x5d0] sm:$0xff]
    %v2132 = vld [vmem:[%s6 + $0x5d8] sm:$0xff]
    %v2133 = vld [vmem:[%s6 + $0x5e0] sm:$0xff]
    %v2134 = vld [vmem:[%s6 + $0x5e8] sm:$0xff]
    %v2135 = vld [vmem:[%s6 + $0x5f0] sm:$0xff]
    %v2136 = vld [vmem:[%s6 + $0x5f8] sm:$0xff]
    %v2137 = vld [vmem:[%s6 + $0x600] sm:$0xff]
    %v2138 = vld [vmem:[%s6 + $0x608] sm:$0xff]
    %v2139 = vld [vmem:[%s6 + $0x610] sm:$0xff]
    %v2140 = vld [vmem:[%s6 + $0x618] sm:$0xff]
    %v2141 = vld [vmem:[%s7] sm:$0x1]
    %v2143 = vlaneseq
    %v2144 = vshrl.u32 %v2143, 7
    %v2145 = vsub.s32 0, %v2144
    %v2146 = vrot.slane %v2141, %v2145
    %vm2148 = vcmask 261120
    %v2149 = vsel %vm2148, %v1864, 0
    %2151 = vmatprep.subr.mxu0 0.0
    %2152 = vmatpush1.msra.mxu0 %v1945
    %2153 = vmatprep.subr.mxu0 0.0
    %2154 = vmatpush1.msra.mxu0 %v1946
    %2155 = vmatprep.subr.mxu0 0.0
    %2156 = vmatpush1.msra.mxu0 %v1947
    %2157 = vmatprep.subr.mxu0 0.0
    %2158 = vmatpush1.msra.mxu0 %v1948
    %2159 = vmatprep.subr.mxu0 0.0
    %2160 = vmatpush1.msra.mxu0 %v1949
    %2161 = vmatprep.subr.mxu0 0.0
    %2162 = vmatpush1.msra.mxu0 %v1950
    %2163 = vmatprep.subr.mxu0 0.0
    %2164 = vmatpush1.msra.mxu0 %v1951
    %2165 = vmatprep.subr.mxu0 0.0
    %2166 = vmatpush1.msra.mxu0 %v1952
    %2167 = vmatprep.subr.mxu0 0.0
    %2168 = vmatpush1.msra.mxu0 %v1953
    %2169 = vmatprep.subr.mxu0 0.0
    %2170 = vmatpush1.msra.mxu0 %v1954
    %2171 = vmatprep.subr.mxu0 0.0
    %2172 = vmatpush1.msra.mxu0 %v1955
    %2173 = vmatprep.subr.mxu0 0.0
    %2174 = vmatpush1.msra.mxu0 %v1956
    %2175 = vmatprep.subr.mxu0 0.0
    %2176 = vmatpush1.msra.mxu0 %v1957
    %2177 = vmatprep.subr.mxu0 0.0
    %2178 = vmatpush1.msra.mxu0 %v1958
    %2179 = vmatprep.subr.mxu0 0.0
    %2180 = vmatpush1.msra.mxu0 %v1959
    %2181 = vmatprep.subr.mxu0 0.0
    %2182 = vmatpush1.msra.mxu0 %v1960
    %2183 = vmatprep.subr.mxu0 0.0
    %2184 = vmatpush1.msra.mxu0 %v1961
    %2185 = vmatprep.subr.mxu0 0.0
    %2186 = vmatpush1.msra.mxu0 %v1962
    %2187 = vmatprep.subr.mxu0 0.0
    %2188 = vmatpush1.msra.mxu0 %v1963
    %2189 = vmatprep.subr.mxu0 0.0
    %2190 = vmatpush1.msra.mxu0 %v1964
    %2191 = vmatprep.subr.mxu0 0.0
    %2192 = vmatpush1.msra.mxu0 %v1965
    %2193 = vmatprep.subr.mxu0 0.0
    %2194 = vmatpush1.msra.mxu0 %v1966
    %2195 = vmatprep.subr.mxu0 0.0
    %2196 = vmatpush1.msra.mxu0 %v1967
    %2197 = vmatprep.subr.mxu0 0.0
    %2198 = vmatpush1.msra.mxu0 %v1968
    %2199 = vmatprep.subr.mxu0 0.0
    %2200 = vmatpush1.msra.mxu0 %v1969
    %2201 = vmatprep.subr.mxu0 0.0
    %2202 = vmatpush1.msra.mxu0 %v1970
    %2203 = vmatprep.subr.mxu0 0.0
    %2204 = vmatpush1.msra.mxu0 %v1971
    %2205 = vmatprep.subr.mxu0 0.0
    %2206 = vmatpush1.msra.mxu0 %v1972
    %2207 = vmatprep.subr.mxu0 0.0
    %2208 = vmatpush1.msra.mxu0 %v1973
    %2209 = vmatprep.subr.mxu0 0.0
    %2210 = vmatpush1.msra.mxu0 %v1974
    %2211 = vmatprep.subr.mxu0 0.0
    %2212 = vmatpush1.msra.mxu0 %v1975
    %2213 = vmatprep.subr.mxu0 0.0
    %2214 = vmatpush1.msra.mxu0 %v1976
    %2215 = vmatprep.mubr.f32.mxu0 %v1853
    %2216 = vmatmul.mubr.f32.gmra.mrb[0].mxu0 %v1852
    %v2217 = vpop.f32.mrb[0].mxu0
    %v2218 = vadd.f32 %v2146, %v2217
    %v2219 = vpop.f32.mrb[0].mxu0
    %2220 = vdwg.mxu0
    %2221 = vmatprep.subr.mxu0 0.0
    %2222 = vmatpush1.msra.mxu0 %v1977
    %2223 = vmatprep.subr.mxu0 0.0
    %2224 = vmatpush1.msra.mxu0 %v1978
    %2225 = vmatprep.subr.mxu0 0.0
    %2226 = vmatpush1.msra.mxu0 %v1979
    %2227 = vmatprep.subr.mxu0 0.0
    %2228 = vmatpush1.msra.mxu0 %v1980
    %2229 = vmatprep.subr.mxu0 0.0
    %2230 = vmatpush1.msra.mxu0 %v1981
    %2231 = vmatprep.subr.mxu0 0.0
    %2232 = vmatpush1.msra.mxu0 %v1982
    %2233 = vmatprep.subr.mxu0 0.0
    %2234 = vmatpush1.msra.mxu0 %v1983
    %2235 = vmatprep.subr.mxu0 0.0
    %2236 = vmatpush1.msra.mxu0 %v1984
    %2237 = vmatprep.subr.mxu0 0.0
    %2238 = vmatpush1.msra.mxu0 %v1985
    %2239 = vmatprep.subr.mxu0 0.0
    %2240 = vmatpush1.msra.mxu0 %v1986
    %2241 = vmatprep.subr.mxu0 0.0
    %2242 = vmatpush1.msra.mxu0 %v1987
    %2243 = vmatprep.subr.mxu0 0.0
    %2244 = vmatpush1.msra.mxu0 %v1988
    %2245 = vmatprep.subr.mxu0 0.0
    %2246 = vmatpush1.msra.mxu0 %v1989
    %2247 = vmatprep.subr.mxu0 0.0
    %2248 = vmatpush1.msra.mxu0 %v1990
    %2249 = vmatprep.subr.mxu0 0.0
    %2250 = vmatpush1.msra.mxu0 %v1991
    %2251 = vmatprep.subr.mxu0 0.0
    %2252 = vmatpush1.msra.mxu0 %v1992
    %2253 = vmatprep.subr.mxu0 0.0
    %2254 = vmatpush1.msra.mxu0 %v1993
    %2255 = vmatprep.subr.mxu0 0.0
    %2256 = vmatpush1.msra.mxu0 %v1994
    %2257 = vmatprep.subr.mxu0 0.0
    %2258 = vmatpush1.msra.mxu0 %v1995
    %2259 = vmatprep.subr.mxu0 0.0
    %2260 = vmatpush1.msra.mxu0 %v1996
    %2261 = vmatprep.subr.mxu0 0.0
    %2262 = vmatpush1.msra.mxu0 %v1997
    %2263 = vmatprep.subr.mxu0 0.0
    %2264 = vmatpush1.msra.mxu0 %v1998
    %2265 = vmatprep.subr.mxu0 0.0
    %2266 = vmatpush1.msra.mxu0 %v1999
    %2267 = vmatprep.subr.mxu0 0.0
    %2268 = vmatpush1.msra.mxu0 %v2000
    %2269 = vmatprep.subr.mxu0 0.0
    %2270 = vmatpush1.msra.mxu0 %v2001
    %2271 = vmatprep.subr.mxu0 0.0
    %2272 = vmatpush1.msra.mxu0 %v2002
    %2273 = vmatprep.subr.mxu0 0.0
    %2274 = vmatpush1.msra.mxu0 %v2003
    %2275 = vmatprep.subr.mxu0 0.0
    %2276 = vmatpush1.msra.mxu0 %v2004
    %2277 = vmatprep.subr.mxu0 0.0
    %2278 = vmatpush1.msra.mxu0 %v2005
    %2279 = vmatprep.subr.mxu0 0.0
    %2280 = vmatpush1.msra.mxu0 %v2006
    %2281 = vmatprep.subr.mxu0 0.0
    %2282 = vmatpush1.msra.mxu0 %v2007
    %2283 = vmatprep.subr.mxu0 0.0
    %2284 = vmatpush1.msra.mxu0 %v2008
    %2285 = vmatprep.mubr.f32.mxu0 %v1855
    %2286 = vmatmul.mubr.f32.gmra.mrb[0].mxu0 %v1854
    %v2287 = vpop.f32.mrb[0].mxu0
    %v2288 = vadd.f32 %v2218, %v2287
    %v2289 = vpop.f32.mrb[0].mxu0
    %2290 = vdwg.mxu0
    %2291 = vmatprep.subr.mxu0 0.0
    %2292 = vmatpush1.msra.mxu0 %v2009
    %2293 = vmatprep.subr.mxu0 0.0
    %2294 = vmatpush1.msra.mxu0 %v2010
    %2295 = vmatprep.subr.mxu0 0.0
    %2296 = vmatpush1.msra.mxu0 %v2011
    %2297 = vmatprep.subr.mxu0 0.0
    %2298 = vmatpush1.msra.mxu0 %v2012
    %2299 = vmatprep.subr.mxu0 0.0
    %2300 = vmatpush1.msra.mxu0 %v2013
    %2301 = vmatprep.subr.mxu0 0.0
    %2302 = vmatpush1.msra.mxu0 %v2014
    %2303 = vmatprep.subr.mxu0 0.0
    %2304 = vmatpush1.msra.mxu0 %v2015
    %2305 = vmatprep.subr.mxu0 0.0
    %2306 = vmatpush1.msra.mxu0 %v2016
    %2307 = vmatprep.subr.mxu0 0.0
    %2308 = vmatpush1.msra.mxu0 %v2017
    %2309 = vmatprep.subr.mxu0 0.0
    %2310 = vmatpush1.msra.mxu0 %v2018
    %2311 = vmatprep.subr.mxu0 0.0
    %2312 = vmatpush1.msra.mxu0 %v2019
    %2313 = vmatprep.subr.mxu0 0.0
    %2314 = vmatpush1.msra.mxu0 %v2020
    %2315 = vmatprep.subr.mxu0 0.0
    %2316 = vmatpush1.msra.mxu0 %v2021
    %2317 = vmatprep.subr.mxu0 0.0
    %2318 = vmatpush1.msra.mxu0 %v2022
    %2319 = vmatprep.subr.mxu0 0.0
    %2320 = vmatpush1.msra.mxu0 %v2023
    %2321 = vmatprep.subr.mxu0 0.0
    %2322 = vmatpush1.msra.mxu0 %v2024
    %2323 = vmatprep.subr.mxu0 0.0
    %2324 = vmatpush1.msra.mxu0 %v2025
    %2325 = vmatprep.subr.mxu0 0.0
    %2326 = vmatpush1.msra.mxu0 %v2026
    %2327 = vmatprep.subr.mxu0 0.0
    %2328 = vmatpush1.msra.mxu0 %v2027
    %2329 = vmatprep.subr.mxu0 0.0
    %2330 = vmatpush1.msra.mxu0 %v2028
    %2331 = vmatprep.subr.mxu0 0.0
    %2332 = vmatpush1.msra.mxu0 %v2029
    %2333 = vmatprep.subr.mxu0 0.0
    %2334 = vmatpush1.msra.mxu0 %v2030
    %2335 = vmatprep.subr.mxu0 0.0
    %2336 = vmatpush1.msra.mxu0 %v2031
    %2337 = vmatprep.subr.mxu0 0.0
    %2338 = vmatpush1.msra.mxu0 %v2032
    %2339 = vmatprep.subr.mxu0 0.0
    %2340 = vmatpush1.msra.mxu0 %v2033
    %2341 = vmatprep.subr.mxu0 0.0
    %2342 = vmatpush1.msra.mxu0 %v2034
    %2343 = vmatprep.subr.mxu0 0.0
    %2344 = vmatpush1.msra.mxu0 %v2035
    %2345 = vmatprep.subr.mxu0 0.0
    %2346 = vmatpush1.msra.mxu0 %v2036
    %2347 = vmatprep.subr.mxu0 0.0
    %2348 = vmatpush1.msra.mxu0 %v2037
    %2349 = vmatprep.subr.mxu0 0.0
    %2350 = vmatpush1.msra.mxu0 %v2038
    %2351 = vmatprep.subr.mxu0 0.0
    %2352 = vmatpush1.msra.mxu0 %v2039
    %2353 = vmatprep.subr.mxu0 0.0
    %2354 = vmatpush1.msra.mxu0 %v2040
    %2355 = vmatprep.mubr.f32.mxu0 %v1857
    %2356 = vmatmul.mubr.f32.gmra.mrb[0].mxu0 %v1856
    %v2357 = vpop.f32.mrb[0].mxu0
    %v2358 = vadd.f32 %v2288, %v2357
    %v2359 = vpop.f32.mrb[0].mxu0
    %2360 = vdwg.mxu0
    %2361 = vmatprep.subr.mxu0 0.0
    %2362 = vmatpush1.msra.mxu0 %v2041
    %2363 = vmatprep.subr.mxu0 0.0
    %2364 = vmatpush1.msra.mxu0 %v2042
    %2365 = vmatprep.subr.mxu0 0.0
    %2366 = vmatpush1.msra.mxu0 %v2043
    %2367 = vmatprep.subr.mxu0 0.0
    %2368 = vmatpush1.msra.mxu0 %v2044
    %2369 = vmatprep.subr.mxu0 0.0
    %2370 = vmatpush1.msra.mxu0 %v2045
    %2371 = vmatprep.subr.mxu0 0.0
    %2372 = vmatpush1.msra.mxu0 %v2046
    %2373 = vmatprep.subr.mxu0 0.0
    %2374 = vmatpush1.msra.mxu0 %v2047
    %2375 = vmatprep.subr.mxu0 0.0
    %2376 = vmatpush1.msra.mxu0 %v2048
    %2377 = vmatprep.subr.mxu0 0.0
    %2378 = vmatpush1.msra.mxu0 %v2049
    %2379 = vmatprep.subr.mxu0 0.0
    %2380 = vmatpush1.msra.mxu0 %v2050
    %2381 = vmatprep.subr.mxu0 0.0
    %2382 = vmatpush1.msra.mxu0 %v2051
    %2383 = vmatprep.subr.mxu0 0.0
    %2384 = vmatpush1.msra.mxu0 %v2052
    %2385 = vmatprep.subr.mxu0 0.0
    %2386 = vmatpush1.msra.mxu0 %v2053
    %2387 = vmatprep.subr.mxu0 0.0
    %2388 = vmatpush1.msra.mxu0 %v2054
    %2389 = vmatprep.subr.mxu0 0.0
    %2390 = vmatpush1.msra.mxu0 %v2055
    %2391 = vmatprep.subr.mxu0 0.0
    %2392 = vmatpush1.msra.mxu0 %v2056
    %2393 = vmatprep.subr.mxu0 0.0
    %2394 = vmatpush1.msra.mxu0 %v2057
    %2395 = vmatprep.subr.mxu0 0.0
    %2396 = vmatpush1.msra.mxu0 %v2058
    %2397 = vmatprep.subr.mxu0 0.0
    %2398 = vmatpush1.msra.mxu0 %v2059
    %2399 = vmatprep.subr.mxu0 0.0
    %2400 = vmatpush1.msra.mxu0 %v2060
    %2401 = vmatprep.subr.mxu0 0.0
    %2402 = vmatpush1.msra.mxu0 %v2061
    %2403 = vmatprep.subr.mxu0 0.0
    %2404 = vmatpush1.msra.mxu0 %v2062
    %2405 = vmatprep.subr.mxu0 0.0
    %2406 = vmatpush1.msra.mxu0 %v2063
    %2407 = vmatprep.subr.mxu0 0.0
    %2408 = vmatpush1.msra.mxu0 %v2064
    %2409 = vmatprep.subr.mxu0 0.0
    %2410 = vmatpush1.msra.mxu0 %v2065
    %2411 = vmatprep.subr.mxu0 0.0
    %2412 = vmatpush1.msra.mxu0 %v2066
    %2413 = vmatprep.subr.mxu0 0.0
    %2414 = vmatpush1.msra.mxu0 %v2067
    %2415 = vmatprep.subr.mxu0 0.0
    %2416 = vmatpush1.msra.mxu0 %v2068
    %2417 = vmatprep.subr.mxu0 0.0
    %2418 = vmatpush1.msra.mxu0 %v2069
    %2419 = vmatprep.subr.mxu0 0.0
    %2420 = vmatpush1.msra.mxu0 %v2070
    %2421 = vmatprep.subr.mxu0 0.0
    %2422 = vmatpush1.msra.mxu0 %v2071
    %2423 = vmatprep.subr.mxu0 0.0
    %2424 = vmatpush1.msra.mxu0 %v2072
    %2425 = vmatprep.mubr.f32.mxu0 %v1859
    %2426 = vmatmul.mubr.f32.gmra.mrb[0].mxu0 %v1858
    %v2427 = vpop.f32.mrb[0].mxu0
    %v2428 = vadd.f32 %v2358, %v2427
    %v2429 = vpop.f32.mrb[0].mxu0
    %2430 = vdwg.mxu0
    %2431 = vmatprep.subr.mxu0 0.0
    %2432 = vmatpush1.msra.mxu0 %v2073
    %2433 = vmatprep.subr.mxu0 0.0
    %2434 = vmatpush1.msra.mxu0 %v2074
    %2435 = vmatprep.subr.mxu0 0.0
    %2436 = vmatpush1.msra.mxu0 %v2075
    %2437 = vmatprep.subr.mxu0 0.0
    %2438 = vmatpush1.msra.mxu0 %v2076
    %2439 = vmatprep.subr.mxu0 0.0
    %2440 = vmatpush1.msra.mxu0 %v2077
    %2441 = vmatprep.subr.mxu0 0.0
    %2442 = vmatpush1.msra.mxu0 %v2078
    %2443 = vmatprep.subr.mxu0 0.0
    %2444 = vmatpush1.msra.mxu0 %v2079
    %2445 = vmatprep.subr.mxu0 0.0
    %2446 = vmatpush1.msra.mxu0 %v2080
    %2447 = vmatprep.subr.mxu0 0.0
    %2448 = vmatpush1.msra.mxu0 %v2081
    %2449 = vmatprep.subr.mxu0 0.0
    %2450 = vmatpush1.msra.mxu0 %v2082
    %2451 = vmatprep.subr.mxu0 0.0
    %2452 = vmatpush1.msra.mxu0 %v2083
    %2453 = vmatprep.subr.mxu0 0.0
    %2454 = vmatpush1.msra.mxu0 %v2084
    %2455 = vmatprep.subr.mxu0 0.0
    %2456 = vmatpush1.msra.mxu0 %v2085
    %2457 = vmatprep.subr.mxu0 0.0
    %2458 = vmatpush1.msra.mxu0 %v2086
    %2459 = vmatprep.subr.mxu0 0.0
    %2460 = vmatpush1.msra.mxu0 %v2087
    %2461 = vmatprep.subr.mxu0 0.0
    %2462 = vmatpush1.msra.mxu0 %v2088
    %2463 = vmatprep.subr.mxu0 0.0
    %2464 = vmatpush1.msra.mxu0 %v2089
    %2465 = vmatprep.subr.mxu0 0.0
    %2466 = vmatpush1.msra.mxu0 %v2090
    %2467 = vmatprep.subr.mxu0 0.0
    %2468 = vmatpush1.msra.mxu0 %v2091
    %2469 = vmatprep.subr.mxu0 0.0
    %2470 = vmatpush1.msra.mxu0 %v2092
    %2471 = vmatprep.subr.mxu0 0.0
    %2472 = vmatpush1.msra.mxu0 %v2093
    %2473 = vmatprep.subr.mxu0 0.0
    %2474 = vmatpush1.msra.mxu0 %v2094
    %2475 = vmatprep.subr.mxu0 0.0
    %2476 = vmatpush1.msra.mxu0 %v2095
    %2477 = vmatprep.subr.mxu0 0.0
    %2478 = vmatpush1.msra.mxu0 %v2096
    %2479 = vmatprep.subr.mxu0 0.0
    %2480 = vmatpush1.msra.mxu0 %v2097
    %2481 = vmatprep.subr.mxu0 0.0
    %2482 = vmatpush1.msra.mxu0 %v2098
    %2483 = vmatprep.subr.mxu0 0.0
    %2484 = vmatpush1.msra.mxu0 %v2099
    %2485 = vmatprep.subr.mxu0 0.0
    %2486 = vmatpush1.msra.mxu0 %v2100
    %2487 = vmatprep.subr.mxu0 0.0
    %2488 = vmatpush1.msra.mxu0 %v2101
    %2489 = vmatprep.subr.mxu0 0.0
    %2490 = vmatpush1.msra.mxu0 %v2102
    %2491 = vmatprep.subr.mxu0 0.0
    %2492 = vmatpush1.msra.mxu0 %v2103
    %2493 = vmatprep.subr.mxu0 0.0
    %2494 = vmatpush1.msra.mxu0 %v2104
    %2495 = vmatprep.mubr.f32.mxu0 %v1861
    %2496 = vmatmul.mubr.f32.gmra.mrb[0].mxu0 %v1860
    %v2497 = vpop.f32.mrb[0].mxu0
    %v2498 = vadd.f32 %v2428, %v2497
    %v2499 = vpop.f32.mrb[0].mxu0
    %2500 = vdwg.mxu0
    %2501 = vmatprep.subr.mxu0 0.0
    %2502 = vmatpush1.msra.mxu0 %v2105
    %2503 = vmatprep.subr.mxu0 0.0
    %2504 = vmatpush1.msra.mxu0 %v2106
    %2505 = vmatprep.subr.mxu0 0.0
    %2506 = vmatpush1.msra.mxu0 %v2107
    %2507 = vmatprep.subr.mxu0 0.0
    %2508 = vmatpush1.msra.mxu0 %v2108
    %2509 = vmatprep.subr.mxu0 0.0
    %2510 = vmatpush1.msra.mxu0 %v2109
    %2511 = vmatprep.subr.mxu0 0.0
    %2512 = vmatpush1.msra.mxu0 %v2110
    %2513 = vmatprep.subr.mxu0 0.0
    %2514 = vmatpush1.msra.mxu0 %v2111
    %2515 = vmatprep.subr.mxu0 0.0
    %2516 = vmatpush1.msra.mxu0 %v2112
    %2517 = vmatprep.subr.mxu0 0.0
    %2518 = vmatpush1.msra.mxu0 %v2113
    %2519 = vmatprep.subr.mxu0 0.0
    %2520 = vmatpush1.msra.mxu0 %v2114
    %2521 = vmatprep.subr.mxu0 0.0
    %2522 = vmatpush1.msra.mxu0 %v2115
    %2523 = vmatprep.subr.mxu0 0.0
    %2524 = vmatpush1.msra.mxu0 %v2116
    %2525 = vmatprep.subr.mxu0 0.0
    %2526 = vmatpush1.msra.mxu0 %v2117
    %2527 = vmatprep.subr.mxu0 0.0
    %2528 = vmatpush1.msra.mxu0 %v2118
    %2529 = vmatprep.subr.mxu0 0.0
    %2530 = vmatpush1.msra.mxu0 %v2119
    %2531 = vmatprep.subr.mxu0 0.0
    %2532 = vmatpush1.msra.mxu0 %v2120
    %2533 = vmatprep.subr.mxu0 0.0
    %2534 = vmatpush1.msra.mxu0 %v2121
    %2535 = vmatprep.subr.mxu0 0.0
    %2536 = vmatpush1.msra.mxu0 %v2122
    %2537 = vmatprep.subr.mxu0 0.0
    %2538 = vmatpush1.msra.mxu0 %v2123
    %2539 = vmatprep.subr.mxu0 0.0
    %2540 = vmatpush1.msra.mxu0 %v2124
    %2541 = vmatprep.subr.mxu0 0.0
    %2542 = vmatpush1.msra.mxu0 %v2125
    %2543 = vmatprep.subr.mxu0 0.0
    %2544 = vmatpush1.msra.mxu0 %v2126
    %2545 = vmatprep.subr.mxu0 0.0
    %2546 = vmatpush1.msra.mxu0 %v2127
    %2547 = vmatprep.subr.mxu0 0.0
    %2548 = vmatpush1.msra.mxu0 %v2128
    %2549 = vmatprep.subr.mxu0 0.0
    %2550 = vmatpush1.msra.mxu0 %v2129
    %2551 = vmatprep.subr.mxu0 0.0
    %2552 = vmatpush1.msra.mxu0 %v2130
    %2553 = vmatprep.subr.mxu0 0.0
    %2554 = vmatpush1.msra.mxu0 %v2131
    %2555 = vmatprep.subr.mxu0 0.0
    %2556 = vmatpush1.msra.mxu0 %v2132
    %2557 = vmatprep.subr.mxu0 0.0
    %2558 = vmatpush1.msra.mxu0 %v2133
    %2559 = vmatprep.subr.mxu0 0.0
    %2560 = vmatpush1.msra.mxu0 %v2134
    %2561 = vmatprep.subr.mxu0 0.0
    %2562 = vmatpush1.msra.mxu0 %v2135
    %2563 = vmatprep.subr.mxu0 0.0
    %2564 = vmatpush1.msra.mxu0 %v2136
    %2565 = vmatprep.mubr.f32.mxu0 %v1863
    %2566 = vmatmul.mubr.f32.gmra.mrb[0].mxu0 %v1862
    %v2567 = vpop.f32.mrb[0].mxu0
    %v2568 = vadd.f32 %v2498, %v2567
    %v2569 = vpop.f32.mrb[0].mxu0
    %2570 = vdwg.mxu0
    %2571 = vmatprep.subr.mxu0 0.0
    %2572 = vmatpush1.msra.mxu0 %v2137
    %2573 = vmatprep.subr.mxu0 0.0
    %2574 = vmatpush1.msra.mxu0 %v2138
    %2575 = vmatprep.subr.mxu0 0.0
    %2576 = vmatpush1.msra.mxu0 %v2139
    %2577 = vmatprep.subr.mxu0 0.0
    %2578 = vmatpush1.msra.mxu0 %v2140
    %2579 = vmatprep.subr.mxu0 0.0
    %2580 = vmatpush1.msra.mxu0 0.0
    %2581 = vmatprep.subr.mxu0 0.0
    %2582 = vmatpush1.msra.mxu0 0.0
    %2583 = vmatprep.subr.mxu0 0.0
    %2584 = vmatpush1.msra.mxu0 0.0
    %2585 = vmatprep.subr.mxu0 0.0
    %2586 = vmatpush1.msra.mxu0 0.0
    %2587 = vmatprep.subr.mxu0 0.0
    %2588 = vmatpush1.msra.mxu0 0.0
    %2589 = vmatprep.subr.mxu0 0.0
    %2590 = vmatpush1.msra.mxu0 0.0
    %2591 = vmatprep.subr.mxu0 0.0
    %2592 = vmatpush1.msra.mxu0 0.0
    %2593 = vmatprep.subr.mxu0 0.0
    %2594 = vmatpush1.msra.mxu0 0.0
    %2595 = vmatprep.subr.mxu0 0.0
    %2596 = vmatpush1.msra.mxu0 0.0
    %2597 = vmatprep.subr.mxu0 0.0
    %2598 = vmatpush1.msra.mxu0 0.0
    %2599 = vmatprep.subr.mxu0 0.0
    %2600 = vmatpush1.msra.mxu0 0.0
    %2601 = vmatprep.subr.mxu0 0.0
    %2602 = vmatpush1.msra.mxu0 0.0
    %2603 = vmatprep.subr.mxu0 0.0
    %2604 = vmatpush1.msra.mxu0 0.0
    %2605 = vmatprep.subr.mxu0 0.0
    %2606 = vmatpush1.msra.mxu0 0.0
    %2607 = vmatprep.subr.mxu0 0.0
    %2608 = vmatpush1.msra.mxu0 0.0
    %2609 = vmatprep.subr.mxu0 0.0
    %2610 = vmatpush1.msra.mxu0 0.0
    %2611 = vmatprep.subr.mxu0 0.0
    %2612 = vmatpush1.msra.mxu0 0.0
    %2613 = vmatprep.subr.mxu0 0.0
    %2614 = vmatpush1.msra.mxu0 0.0
    %2615 = vmatprep.subr.mxu0 0.0
    %2616 = vmatpush1.msra.mxu0 0.0
    %2617 = vmatprep.subr.mxu0 0.0
    %2618 = vmatpush1.msra.mxu0 0.0
    %2619 = vmatprep.subr.mxu0 0.0
    %2620 = vmatpush1.msra.mxu0 0.0
    %2621 = vmatprep.subr.mxu0 0.0
    %2622 = vmatpush1.msra.mxu0 0.0
    %2623 = vmatprep.subr.mxu0 0.0
    %2624 = vmatpush1.msra.mxu0 0.0
    %2625 = vmatprep.subr.mxu0 0.0
    %2626 = vmatpush1.msra.mxu0 0.0
    %2627 = vmatprep.subr.mxu0 0.0
    %2628 = vmatpush1.msra.mxu0 0.0
    %2629 = vmatprep.subr.mxu0 0.0
    %2630 = vmatpush1.msra.mxu0 0.0
    %2631 = vmatprep.subr.mxu0 0.0
    %2632 = vmatpush1.msra.mxu0 0.0
    %2633 = vmatprep.subr.mxu0 0.0
    %2634 = vmatpush1.msra.mxu0 0.0
    %2635 = vmatprep.mubr.f32.mxu0 0.0
    %2636 = vmatmul.mubr.f32.gmra.mrb[0].mxu0 %v2149
    %v2637 = vpop.f32.mrb[0].mxu0
    %v2638 = vadd.f32 %v2568, %v2637
    %v2639 = vpop.f32.mrb[0].mxu0
    %2640 = vdwg.mxu0
    %vm2641 = vcmask 74752
    %2642 = vst.msk [vmem:[#allocation2] sm:$0x3] %vm2641, %v2638
    // Predicated region
    $region34: #{model_forward.1} parent=1 // pred_check
      _
    $region35: #{model_forward.1} parent=1 // pred_check_branch
      %2644 = sbr.rel (0) target = $region37
    $region36: #{model_forward.1} parent=1 // pred_region
      %s2646 = ssub.s32 32, 32
      %2647 = vsyncadd [#allocation3], %s2646
      %s2649 = sshll.u32 [#allocation2], 4
      %s2650 = int_to_ptr.vmem [resolvable:$true] %s2649
      %2652 = dma.vmem_to_hbm [thread:$0]  %s2650, 32, %s8, [#allocation3]
    $region37: #{model_forward.1} parent=1 // pred_fallthru
      _
    // Predicated region
    $region38: #{model_forward.1} parent=1 // pred_check
      _
    $region39: #{model_forward.1} parent=1 // pred_check_branch
      %2654 = sbr.rel (0) target = $region41
    $region40: #{model_forward.1} parent=1 // pred_region
      %s2656 = ssub.s32 416, 416
      %2657 = vsyncadd [#allocation5], %s2656
      %s2659 = sshll.u32 [#allocation4], 4
      %s2660 = int_to_ptr.vmem [resolvable:$true] %s2659
      %2662 = dma.vmem_to_hbm [thread:$0]  %s2660, 416, %s9, [#allocation5]
    $region41: #{model_forward.1} parent=1 // pred_fallthru
      _
    // Predicated region
    $region42: #{model_forward.1} parent=1 // pred_check
      _
    $region43: #{model_forward.1} parent=1 // pred_check_branch
      %2664 = sbr.rel (0) target = $region45
    $region44: #{model_forward.1} parent=1 // pred_region
      %2665 = dma.done [#allocation3], 32
    $region45: #{model_forward.1} parent=1 // pred_fallthru
      _
    // Predicated region
    $region46: #{model_forward.1} parent=1 // pred_check
      _
    $region47: #{model_forward.1} parent=1 // pred_check_branch
      %2667 = sbr.rel (0) target = $region49
    $region48: #{model_forward.1} parent=1 // pred_region
      %2668 = dma.done [#allocation5], 416
    $region49: #{model_forward.1} parent=1 // pred_fallthru
      _
    %2669 = vsyncpa [#allocation3], 1
    %2670 = vsyncpa [#allocation5], 1

</llo_original>
